<compile_context>
chip_gen: v7x
topology: tpu7x:2x2x1
jax: 0.10.0
libtpu: 0.0.40
codegen_flags: <defaults>
</compile_context>

<pallas_src>
import math

import jax
import jax.numpy as jnp
from jax.experimental import pallas as pl
from jax.experimental.pallas import tpu as pltpu

# ---------------- static synthetic config ----------------
N_IMG = 2
C_FEAT = 16
H_FEAT = 16
W_FEAT = 16
IMG_H = 128
IMG_W = 128
ANCHOR_SIZES = (32.0,)
ASPECT_RATIOS = (0.5, 1.0, 2.0)
NUM_ANCHORS = len(ANCHOR_SIZES) * len(ASPECT_RATIOS)  # A = 3
PRE_NMS_TOP_N = 200
POST_NMS_TOP_N = 50
NMS_THRESH = 0.7
MIN_SIZE = 0.001
BBOX_XFORM_CLIP = math.log(1000.0 / 16.0)

A = NUM_ANCHORS
OUT_W = 128                       # lane-dense fused output width (one vreg wide)
# --- component-major output column layout ---
COL_SCORE = 0                     # [0,  A)   raw objectness logits
COL_X1 = A                        # [A, 2A)
COL_Y1 = 2 * A                    # [2A,3A)
COL_X2 = 3 * A                    # [3A,4A)
COL_Y2 = 4 * A                    # [4A,5A)
COL_KEEP = 5 * A                  # [5A,6A)   keep mask (w,h >= min_size)
N_USED = 6 * A                    # 18 useful columns
ANC_W = 6 * A                     # per-row aux: wa|ha|cxa|cya|img_w|img_h (each A wide)


# ===================== Pallas kernel =====================
def rpn_fused_kernel(x_ref, w1_ref, b1_ref, w2_ref, b2_ref, anc_ref, out_ref):
    """Fused RPN head + box decode/clip/min-size mask (component-major layout).

    x_ref   : (tm, C*9)    bf16 im2col patches
    w1_ref  : (C*9, C)     bf16 3x3 conv weight
    b1_ref  : (1, C)       f32
    w2_ref  : (C, OUT_W)   bf16 packed [cls(A)|dx(A)|dy(A)|dw(A)|dh(A)|0] weights
    b2_ref  : (1, OUT_W)   f32  packed biases (same layout)
    anc_ref : (tm, 6A)     f32  [wa(A)|ha(A)|cxa(A)|cya(A)|img_w(A)|img_h(A)]
    out_ref : (tm, OUT_W)  f32  [logits(A)|x1|y1|x2|y2|keep|0-pad]
    """
    # 3x3 conv as one MXU matmul over im2col patches (+bias, ReLU) in f32.
    h = jnp.dot(x_ref[...], w1_ref[...], preferred_element_type=jnp.float32)
    h = jnp.maximum(h + b1_ref[...], 0.0)

    # Single lane-dense packed second matmul: objectness logits + bbox deltas.
    mm = jnp.dot(h.astype(jnp.bfloat16), w2_ref[...],
                 preferred_element_type=jnp.float32) + b2_ref[...]

    logits = mm[:, 0:A]                           # raw objectness (matches reference)

    wh_a = anc_ref[:, 0:2 * A]                    # [wa | ha]
    c_a = anc_ref[:, 2 * A:4 * A]                 # [cxa | cya]
    clip = anc_ref[:, 4 * A:6 * A]                # [img_w | img_h]  per-anchor bounds

    # Vectorized decode over all anchors at once (component-major (tm, 2A) blocks).
    pc = mm[:, A:3 * A] * wh_a + c_a                                   # [pcx | pcy]
    pwh = jnp.exp(jnp.minimum(mm[:, 3 * A:5 * A], BBOX_XFORM_CLIP)) * wh_a  # [pw | ph]
    half = 0.5 * pwh
    p1 = jnp.minimum(jnp.maximum(pc - half, 0.0), clip)                # [x1 | y1] clipped
    p2 = jnp.minimum(jnp.maximum(pc + half, 0.0), clip)                # [x2 | y2] clipped

    ge = (p2 - p1) >= MIN_SIZE                                         # [w>=ms | h>=ms]
    keep = (ge[:, 0:A] & ge[:, A:2 * A]).astype(jnp.float32)

    # mm[:, N_USED:] is exactly zero (w2/b2 are zero-padded past 5A) — reuse it
    # as the lane pad instead of materializing a zeros broadcast.
    out_ref[...] = jnp.concatenate(
        [logits, p1[:, 0:A], p1[:, A:2 * A], p2[:, 0:A], p2[:, A:2 * A],
         keep, mm[:, N_USED:]], axis=1)           # one full-width lane-dense store


# ===================== tiling policy =====================
def _num_tensorcores():
    """Per-chip TensorCore count (v7x has 2). Robust: falls back to 1."""
    try:
        info = pltpu.get_tpu_info()
        for name in ("num_cores", "core_count", "tensorcore_count", "num_tensor_cores"):
            v = getattr(info, name, None)
            if isinstance(v, int) and 0 < v <= 8:
                return v
    except Exception:
        pass
    try:
        kind = jax.devices()[0].device_kind.lower()
        if "v7" in kind or "7x" in kind:
            return 2
    except Exception:
        pass
    return 1


def _pick_tm(M):
    """Cap tm for VMEM safety (v7x: 64 MiB physical) and give each TensorCore
    at least 2 grid steps when that keeps tiles >= 128 rows (pipelining)."""
    n_cores = _num_tensorcores()
    for tm in (1024, 512, 256, 128, 64, 32, 16, 8):
        if tm <= M and M % tm == 0:
            steps = M // tm
            if steps >= 2 * n_cores or tm <= 128:
                return tm
    return M


def rpn_fused_pallas(patches, anc_aux, w1, b1, w2, b2):
    M, K = patches.shape
    c_mid = w1.shape[1]
    tm = _pick_tm(M)
    grid = (M // tm,)
    return pl.pallas_call(
        rpn_fused_kernel,
        grid=grid,
        in_specs=[
            pl.BlockSpec((tm, K), lambda i: (i, 0)),
            pl.BlockSpec((K, c_mid), lambda i: (0, 0)),
            pl.BlockSpec((1, c_mid), lambda i: (0, 0)),
            pl.BlockSpec((c_mid, OUT_W), lambda i: (0, 0)),
            pl.BlockSpec((1, OUT_W), lambda i: (0, 0)),
            pl.BlockSpec((tm, ANC_W), lambda i: (i, 0)),
        ],
        out_specs=pl.BlockSpec((tm, OUT_W), lambda i: (i, 0)),
        out_shape=jax.ShapeDtypeStruct((M, OUT_W), jnp.float32),
        compiler_params=pltpu.CompilerParams(
            dimension_semantics=("parallel",),
            vmem_limit_bytes=32 * 1024 * 1024),
    )(patches, w1, b1, w2, b2, anc_aux)


# ===================== plain-JAX glue =====================
def im2col_3x3(x_nchw):
    # TODO(synk): at realistic FPN sizes fold this into the kernel as 9 shifted
    # (tm,C)@(C,C) bf16 matmuls over an NHWC halo'd block to remove the 9x HBM
    # read amplification; here we at least keep the patches tensor in bf16.
    N, C, H, W = x_nchw.shape
    xp = jnp.pad(x_nchw, ((0, 0), (0, 0), (1, 1), (1, 1)))
    cols = []
    for ky in range(3):
        for kx in range(3):
            cols.append(xp[:, :, ky:ky + H, kx:kx + W])
    patches = jnp.stack(cols, axis=2)            # (N, C, 9, H, W)
    patches = patches.transpose(0, 3, 4, 1, 2)   # (N, H, W, C, 9)
    return patches.reshape(N * H * W, C * 9)


def generate_base_anchors(sizes, aspect_ratios):
    sizes = jnp.asarray(sizes, jnp.float32)
    ars = jnp.asarray(aspect_ratios, jnp.float32)
    h_ratios = jnp.sqrt(ars)
    w_ratios = 1.0 / h_ratios
    ws = (w_ratios[:, None] * sizes[None, :]).reshape(-1)
    hs = (h_ratios[:, None] * sizes[None, :]).reshape(-1)
    base = jnp.stack([-ws, -hs, ws, hs], axis=1) / 2.0
    return jnp.round(base)


def grid_anchors(base, H, W, stride_h, stride_w):
    shifts_x = jnp.arange(W, dtype=jnp.float32) * stride_w
    shifts_y = jnp.arange(H, dtype=jnp.float32) * stride_h
    sy, sx = jnp.meshgrid(shifts_y, shifts_x, indexing="ij")
    shifts = jnp.stack(
        [sx.reshape(-1), sy.reshape(-1), sx.reshape(-1), sy.reshape(-1)], axis=1)
    anchors = (shifts[:, None, :] + base[None, :, :]).reshape(-1, 4)
    return anchors  # (H*W*A, 4), ordered (h, w, a) — matches permute_and_flatten


def build_anchor_aux(anchors_per_image, image_sizes):
    """Component-major per-row decode params + per-image clip bounds:
    [wa(A) | ha(A) | cxa(A) | cya(A) | img_w(A) | img_h(A)]."""
    n = len(image_sizes)
    a4 = anchors_per_image.reshape(-1, A, 4)                  # (HW, A, 4)
    wa = a4[..., 2] - a4[..., 0]
    ha = a4[..., 3] - a4[..., 1]
    cxa = a4[..., 0] + 0.5 * wa
    cya = a4[..., 1] + 0.5 * ha
    aux = jnp.concatenate([wa, ha, cxa, cya], axis=1)         # (HW, 4A) component-major
    aux = jnp.tile(aux, (n, 1))                               # (N*HW, 4A)
    hw = a4.shape[0]
    # per-row clip bounds broadcast over anchors: [img_w x A | img_h x A]
    clip = jnp.asarray([[float(w_)] * A + [float(h_)] * A for (h_, w_) in image_sizes],
                       jnp.float32)                           # (N, 2A)
    clip_rows = jnp.repeat(clip, hw, axis=0)                  # (N*HW, 2A)
    return jnp.concatenate([aux, clip_rows], axis=1)          # (N*HW, 6A)


def box_iou_matrix(a, b):
    area_a = (a[:, 2] - a[:, 0]) * (a[:, 3] - a[:, 1])
    area_b = (b[:, 2] - b[:, 0]) * (b[:, 3] - b[:, 1])
    lt = jnp.maximum(a[:, None, :2], b[None, :, :2])
    rb = jnp.minimum(a[:, None, 2:], b[None, :, 2:])
    wh = jnp.clip(rb - lt, 0.0)
    inter = wh[..., 0] * wh[..., 1]
    return inter / (area_a[:, None] + area_b[None, :] - inter)


def nms(boxes, scores, iou_threshold):
    # TODO(synk): greedy sequential NMS suppression is data-dependent and has no
    # clean Pallas equivalent; implemented in plain JAX (eager, O(N^2) IoU).
    n = int(boxes.shape[0])
    if n == 0:
        return jnp.zeros((0,), jnp.int32)
    order = jnp.argsort(-scores)
    boxes_o = boxes[order]
    iou = box_iou_matrix(boxes_o, boxes_o)
    idx = jnp.arange(n)

    def body(i, keep):
        suppress = (iou[i] > iou_threshold) & (idx > i) & keep[i]
        return keep & (~suppress)

    keep = jax.lax.fori_loop(0, n, body, jnp.ones((n,), bool))
    return order[keep]


def batched_nms(boxes, scores, idxs, iou_threshold):
    if int(boxes.shape[0]) == 0:
        return jnp.zeros((0,), jnp.int32)
    max_coord = jnp.max(boxes)
    offsets = idxs.astype(boxes.dtype) * (max_coord + 1.0)
    boxes_for_nms = boxes + offsets[:, None]
    return nms(boxes_for_nms, scores, iou_threshold)


# ===================== RPN forward =====================
def rpn_forward(features_nchw, params, image_sizes):
    N, C, H, W = features_nchw.shape

    # --- im2col glue (bf16 to halve the 9x-amplified HBM round trip) ---
    patches = im2col_3x3(features_nchw.astype(jnp.bfloat16))  # (N*H*W, C*9) bf16

    # --- anchor generation (glue) ---
    base = generate_base_anchors(ANCHOR_SIZES, ASPECT_RATIOS)
    stride_h = IMG_H // H
    stride_w = IMG_W // W
    anchors_per_image = grid_anchors(base, H, W, stride_h, stride_w)   # (HWA, 4)
    anc_aux = build_anchor_aux(anchors_per_image, image_sizes)         # (N*HW, 6A)
    num_anchors_per_level = [H * W * A]

    # --- packed, component-major, lane-dense head weights: [cls|dx|dy|dw|dh|0] ---
    w_reg_cm = params["w_reg"].reshape(C, A, 4).transpose(0, 2, 1).reshape(C, 4 * A)
    b_reg_cm = params["b_reg"].reshape(1, A, 4).transpose(0, 2, 1).reshape(1, 4 * A)
    w2 = jnp.zeros((C, OUT_W), jnp.float32)
    w2 = w2.at[:, 0:A].set(params["w_cls"])
    w2 = w2.at[:, A:5 * A].set(w_reg_cm)
    b2 = jnp.zeros((1, OUT_W), jnp.float32)
    b2 = b2.at[:, 0:A].set(params["b_cls"])
    b2 = b2.at[:, A:5 * A].set(b_reg_cm)

    # --- fused RPN head + decode/clip/min-size (single Pallas call) ---
    out = rpn_fused_pallas(
        patches, anc_aux,
        params["w_conv"].astype(jnp.bfloat16), params["b_conv"],
        w2.astype(jnp.bfloat16), b2)

    # rows ordered (n, h, w), anchors on columns -> identical ordering to
    # torchvision's concat_box_prediction_layers on the NCHW head outputs.
    objectness = out[:, COL_SCORE:COL_SCORE + A].reshape(N, H * W * A)   # raw logits
    x1 = out[:, COL_X1:COL_X1 + A]
    y1 = out[:, COL_Y1:COL_Y1 + A]
    x2 = out[:, COL_X2:COL_X2 + A]
    y2 = out[:, COL_Y2:COL_Y2 + A]
    proposals = jnp.stack([x1, y1, x2, y2], axis=-1).reshape(N, H * W * A, 4)
    keep_small = out[:, COL_KEEP:COL_KEEP + A].reshape(N, H * W * A) > 0.5

    # --- filter_proposals (glue: per-level top-k, gather, NMS) ---
    # NOTE: boolean-mask indexing below is data-dependent -> wrapper is eager-only.
    levels = jnp.concatenate(
        [jnp.full((n,), i, dtype=jnp.int32)
         for i, n in enumerate(num_anchors_per_level)])
    levels = jnp.broadcast_to(levels[None, :], objectness.shape)

    top_idx_parts = []
    offset = 0
    for n_lvl in num_anchors_per_level:
        ob = objectness[:, offset:offset + n_lvl]
        k = min(PRE_NMS_TOP_N, n_lvl)
        _, idx = jax.lax.top_k(ob, k)
        top_idx_parts.append(idx + offset)
        offset += n_lvl
    top_idx = jnp.concatenate(top_idx_parts, axis=1)

    batch_idx = jnp.arange(N)[:, None]
    objectness_top = objectness[batch_idx, top_idx]
    levels_top = levels[batch_idx, top_idx]
    proposals_top = proposals[batch_idx, top_idx]
    keep_top = keep_small[batch_idx, top_idx]

    final_boxes = []
    final_scores = []
    for i in range(N):
        boxes_i = proposals_top[i]
        scores_i = objectness_top[i]
        lvl_i = levels_top[i]
        km = keep_top[i]
        boxes_i, scores_i, lvl_i = boxes_i[km], scores_i[km], lvl_i[km]
        keep = batched_nms(boxes_i, scores_i, lvl_i, NMS_THRESH)
        keep = keep[:POST_NMS_TOP_N]
        final_boxes.append(boxes_i[keep])
        final_scores.append(scores_i[keep])

    losses = {}  # eval mode (targets=None): no RPN losses
    return final_boxes, losses


# ===================== deterministic parameter init =====================
def init_params(key):
    k1, k2, k3 = jax.random.split(key, 3)
    C = C_FEAT
    # torchvision RPNHead init: normal(std=0.01) weights, zero biases.
    w_conv = 0.01 * jax.random.normal(k1, (C, C, 3, 3), jnp.float32)
    w_cls = 0.01 * jax.random.normal(k2, (A, C, 1, 1), jnp.float32)
    w_reg = 0.01 * jax.random.normal(k3, (4 * A, C, 1, 1), jnp.float32)
    return {
        "w_conv": w_conv.reshape(C, C * 9).T,       # (C*9, C)
        "b_conv": jnp.zeros((1, C), jnp.float32),
        "w_cls": w_cls.reshape(A, C).T,             # (C, A)
        "b_cls": jnp.zeros((1, A), jnp.float32),
        "w_reg": w_reg.reshape(4 * A, C).T,         # (C, 4A), anchor-major columns
        "b_reg": jnp.zeros((1, 4 * A), jnp.float32),
    }


if __name__ == "__main__":
    key = jax.random.PRNGKey(0)
    kx, kp = jax.random.split(key)
    # NCHW features (single FPN level), as the PyTorch module would receive.
    features = jax.random.normal(kx, (N_IMG, C_FEAT, H_FEAT, W_FEAT), jnp.float32)
    params = init_params(kp)
    image_sizes = [(IMG_H, IMG_W)] * N_IMG

    boxes, losses = rpn_forward(features, params, image_sizes)

    for b in boxes:
        jax.block_until_ready(b)
    assert len(boxes) == N_IMG
    assert all(b.ndim == 2 and b.shape[1] == 4 for b in boxes)
    assert losses == {}
    print("KERNEL_OK")
</pallas_src>

<mosaic_0001>
module attributes {stable_mosaic.version = 11 : i64} {
  func.func @rpn_fused_kernel(%arg0: i32, %arg1: memref<256x144xbf16, #tpu.memory_space<vmem>>, %arg2: memref<144x16xbf16, #tpu.memory_space<vmem>>, %arg3: memref<1x16xf32, #tpu.memory_space<vmem>>, %arg4: memref<16x128xbf16, #tpu.memory_space<vmem>>, %arg5: memref<1x128xf32, #tpu.memory_space<vmem>>, %arg6: memref<256x18xf32, #tpu.memory_space<vmem>>, %arg7: memref<256x128xf32, #tpu.memory_space<vmem>>) attributes {dimension_semantics = [#tpu.dimension_semantics<parallel>], iteration_bounds = array<i64: 2>, scalar_prefetch = 0 : i64, scratch_operands = 0 : i64, tpu.core_type = #tpu.core_type<tc>, window_params = [{transform_indices = @transform_0, window_bounds = array<i64: 256, 144>}, {pipeline_mode = #tpu.pipeline_mode<synchronous>, transform_indices = @transform_1, window_bounds = array<i64: 144, 16>}, {pipeline_mode = #tpu.pipeline_mode<synchronous>, transform_indices = @transform_2, window_bounds = array<i64: 1, 16>}, {pipeline_mode = #tpu.pipeline_mode<synchronous>, transform_indices = @transform_3, window_bounds = array<i64: 16, 128>}, {pipeline_mode = #tpu.pipeline_mode<synchronous>, transform_indices = @transform_4, window_bounds = array<i64: 1, 128>}, {transform_indices = @transform_5, window_bounds = array<i64: 256, 18>}, {transform_indices = @transform_6, window_bounds = array<i64: 256, 128>}]} {
    %c0 = arith.constant 0 : index
    %c0_0 = arith.constant 0 : index
    %0 = vector.load %arg1[%c0, %c0_0] : memref<256x144xbf16, #tpu.memory_space<vmem>>, vector<256x144xbf16>
    %c0_1 = arith.constant 0 : index
    %c0_2 = arith.constant 0 : index
    %1 = vector.load %arg2[%c0_1, %c0_2] : memref<144x16xbf16, #tpu.memory_space<vmem>>, vector<144x16xbf16>
    %cst = arith.constant dense<0.000000e+00> : vector<256x16xf32>
    %2 = tpu.matmul %0, %1, %cst {dimension_numbers = #tpu.dot_dimension_numbers<[1], [0], [0], [1], [0, 0, 1, 1], [], []>} : vector<256x144xbf16>, vector<144x16xbf16>, vector<256x16xf32> -> vector<256x16xf32>
    %c0_3 = arith.constant 0 : index
    %c0_4 = arith.constant 0 : index
    %3 = vector.load %arg3[%c0_3, %c0_4] : memref<1x16xf32, #tpu.memory_space<vmem>>, vector<1x16xf32>
    %4 = vector.broadcast %3 : vector<1x16xf32> to vector<256x16xf32>
    %5 = arith.addf %2, %4 : vector<256x16xf32>
    %cst_5 = arith.constant 0.000000e+00 : f32
    %6 = vector.broadcast %cst_5 : f32 to vector<256x16xf32>
    %7 = arith.maximumf %5, %6 : vector<256x16xf32>
    %8 = arith.truncf %7 : vector<256x16xf32> to vector<256x16xbf16>
    %c0_6 = arith.constant 0 : index
    %c0_7 = arith.constant 0 : index
    %9 = vector.load %arg4[%c0_6, %c0_7] : memref<16x128xbf16, #tpu.memory_space<vmem>>, vector<16x128xbf16>
    %cst_8 = arith.constant dense<0.000000e+00> : vector<256x128xf32>
    %10 = tpu.matmul %8, %9, %cst_8 {dimension_numbers = #tpu.dot_dimension_numbers<[1], [0], [0], [1], [0, 0, 1, 1], [], []>} : vector<256x16xbf16>, vector<16x128xbf16>, vector<256x128xf32> -> vector<256x128xf32>
    %c0_9 = arith.constant 0 : index
    %c0_10 = arith.constant 0 : index
    %11 = vector.load %arg5[%c0_9, %c0_10] : memref<1x128xf32, #tpu.memory_space<vmem>>, vector<1x128xf32>
    %12 = vector.broadcast %11 : vector<1x128xf32> to vector<256x128xf32>
    %13 = arith.addf %10, %12 : vector<256x128xf32>
    %14 = vector.extract_strided_slice %13 {offsets = [0, 0], sizes = [256, 3], strides = [1, 1]} : vector<256x128xf32> to vector<256x3xf32>
    %c0_11 = arith.constant 0 : index
    %c0_12 = arith.constant 0 : index
    %15 = vector.load %arg6[%c0_11, %c0_12] : memref<256x18xf32, #tpu.memory_space<vmem>>, vector<256x6xf32>
    %c0_13 = arith.constant 0 : index
    %c6 = arith.constant 6 : index
    %16 = vector.load %arg6[%c0_13, %c6] : memref<256x18xf32, #tpu.memory_space<vmem>>, vector<256x6xf32>
    %c0_14 = arith.constant 0 : index
    %c12 = arith.constant 12 : index
    %17 = vector.load %arg6[%c0_14, %c12] : memref<256x18xf32, #tpu.memory_space<vmem>>, vector<256x6xf32>
    %18 = vector.extract_strided_slice %13 {offsets = [0, 3], sizes = [256, 6], strides = [1, 1]} : vector<256x128xf32> to vector<256x6xf32>
    %19 = arith.mulf %18, %15 : vector<256x6xf32>
    %20 = arith.addf %19, %16 : vector<256x6xf32>
    %21 = vector.extract_strided_slice %13 {offsets = [0, 9], sizes = [256, 6], strides = [1, 1]} : vector<256x128xf32> to vector<256x6xf32>
    %cst_15 = arith.constant 4.13516665 : f32
    %22 = vector.broadcast %cst_15 : f32 to vector<256x6xf32>
    %23 = arith.minimumf %21, %22 : vector<256x6xf32>
    %24 = math.exp %23 : vector<256x6xf32>
    %25 = arith.mulf %24, %15 : vector<256x6xf32>
    %cst_16 = arith.constant 5.000000e-01 : f32
    %26 = vector.broadcast %cst_16 : f32 to vector<256x6xf32>
    %27 = arith.mulf %26, %25 : vector<256x6xf32>
    %28 = arith.subf %20, %27 : vector<256x6xf32>
    %cst_17 = arith.constant 0.000000e+00 : f32
    %29 = vector.broadcast %cst_17 : f32 to vector<256x6xf32>
    %30 = arith.maximumf %28, %29 : vector<256x6xf32>
    %31 = arith.minimumf %30, %17 : vector<256x6xf32>
    %32 = arith.addf %20, %27 : vector<256x6xf32>
    %cst_18 = arith.constant 0.000000e+00 : f32
    %33 = vector.broadcast %cst_18 : f32 to vector<256x6xf32>
    %34 = arith.maximumf %32, %33 : vector<256x6xf32>
    %35 = arith.minimumf %34, %17 : vector<256x6xf32>
    %36 = arith.subf %35, %31 : vector<256x6xf32>
    %cst_19 = arith.constant 1.000000e-03 : f32
    %37 = vector.broadcast %cst_19 : f32 to vector<256x6xf32>
    %38 = arith.cmpf oge, %36, %37 : vector<256x6xf32>
    %39 = vector.extract_strided_slice %38 {offsets = [0, 0], sizes = [256, 3], strides = [1, 1]} : vector<256x6xi1> to vector<256x3xi1>
    %40 = vector.extract_strided_slice %38 {offsets = [0, 3], sizes = [256, 3], strides = [1, 1]} : vector<256x6xi1> to vector<256x3xi1>
    %41 = arith.andi %39, %40 : vector<256x3xi1>
    %42 = arith.extui %41 : vector<256x3xi1> to vector<256x3xi32>
    %43 = arith.sitofp %42 : vector<256x3xi32> to vector<256x3xf32>
    %44 = vector.extract_strided_slice %31 {offsets = [0, 0], sizes = [256, 3], strides = [1, 1]} : vector<256x6xf32> to vector<256x3xf32>
    %45 = vector.extract_strided_slice %31 {offsets = [0, 3], sizes = [256, 3], strides = [1, 1]} : vector<256x6xf32> to vector<256x3xf32>
    %46 = vector.extract_strided_slice %35 {offsets = [0, 0], sizes = [256, 3], strides = [1, 1]} : vector<256x6xf32> to vector<256x3xf32>
    %47 = vector.extract_strided_slice %35 {offsets = [0, 3], sizes = [256, 3], strides = [1, 1]} : vector<256x6xf32> to vector<256x3xf32>
    %48 = vector.extract_strided_slice %13 {offsets = [0, 18], sizes = [256, 110], strides = [1, 1]} : vector<256x128xf32> to vector<256x110xf32>
    %49 = tpu.concatenate %14, %44, %45, %46, %47, %43, %48 in 1 : vector<256x3xf32>, vector<256x3xf32>, vector<256x3xf32>, vector<256x3xf32>, vector<256x3xf32>, vector<256x3xf32>, vector<256x110xf32> -> vector<256x128xf32>
    %c0_20 = arith.constant 0 : index
    %c0_21 = arith.constant 0 : index
    %50 = vector.load %arg7[%c0_20, %c0_21] : memref<256x128xf32, #tpu.memory_space<vmem>>, vector<256x128xf32>
    tpu.vector_store %arg7[%c0_20, %c0_21], %49 {strides = array<i32>} : memref<256x128xf32, #tpu.memory_space<vmem>>, vector<256x128xf32>,
    return
  }
  func.func @transform_0(%arg0: i32) -> (i32, i32) {
    %c0_i32 = arith.constant 0 : i32
    %c0_i32_0 = arith.constant 0 : i32
    return %arg0, %c0_i32 : i32, i32
  }
  func.func @transform_1(%arg0: i32) -> (i32, i32) {
    %c0_i32 = arith.constant 0 : i32
    %c0_i32_0 = arith.constant 0 : i32
    %c0_i32_1 = arith.constant 0 : i32
    return %c0_i32, %c0_i32_0 : i32, i32
  }
  func.func @transform_2(%arg0: i32) -> (i32, i32) {
    %c0_i32 = arith.constant 0 : i32
    %c0_i32_0 = arith.constant 0 : i32
    %c0_i32_1 = arith.constant 0 : i32
    return %c0_i32, %c0_i32_0 : i32, i32
  }
  func.func @transform_3(%arg0: i32) -> (i32, i32) {
    %c0_i32 = arith.constant 0 : i32
    %c0_i32_0 = arith.constant 0 : i32
    %c0_i32_1 = arith.constant 0 : i32
    return %c0_i32, %c0_i32_0 : i32, i32
  }
  func.func @transform_4(%arg0: i32) -> (i32, i32) {
    %c0_i32 = arith.constant 0 : i32
    %c0_i32_0 = arith.constant 0 : i32
    %c0_i32_1 = arith.constant 0 : i32
    return %c0_i32, %c0_i32_0 : i32, i32
  }
  func.func @transform_5(%arg0: i32) -> (i32, i32) {
    %c0_i32 = arith.constant 0 : i32
    %c0_i32_0 = arith.constant 0 : i32
    return %arg0, %c0_i32 : i32, i32
  }
  func.func @transform_6(%arg0: i32) -> (i32, i32) {
    %c0_i32 = arith.constant 0 : i32
    %c0_i32_0 = arith.constant 0 : i32
    return %arg0, %c0_i32 : i32, i32
  }
}

</mosaic_0001>

<llo_original>
// kernel: tpu_custom_call.1
$region0: #{tpu_custom_call.1}
  #allocation0 [shape = 'u32[]', space=smem, size = 0x4, offset = 0x4, fixed_abs, tag = 'smem constant byte address 0x4 - core index']
  #allocation1 [shape = 'u32[144,128]{1,0:T(1,128)}', space=vmem, size = 0x12000, scoped, tag = 'internal scratch']
  %s0 = inlined_call_operand.vmem [shape: bf16[512,144], index: 0, kind: input, shape index: {}]
  %s1 = inlined_call_operand.vmem [shape: bf16[144,16], index: 1, kind: input, shape index: {}]
  %s2 = inlined_call_operand.vmem [shape: f32[1,16], index: 2, kind: input, shape index: {}]
  %s3 = inlined_call_operand.vmem [shape: bf16[16,128], index: 3, kind: input, shape index: {}]
  %s4 = inlined_call_operand.vmem [shape: f32[1,128], index: 4, kind: input, shape index: {}]
  %s5 = inlined_call_operand.vmem [shape: f32[512,18], index: 5, kind: input, shape index: {}]
  %s6 = inlined_call_operand.hbm [shape: f32[512,128], index: 6, kind: output, shape index: {}]
  %s7 = sld [smem:[#allocation0]]
  $region57: #{tpu_custom_call.1} parent=0
    _
  %s9 = ssub.s32 1, %s7
  %s10 = scalar_select 0, %s9, %s7
  $region1: #{tpu_custom_call.1} parent=0
    #allocation2 [shape = 'u8[262144]{0}', space=vmem, size = 0x40000, scoped, tag = 'output window, operand 0']
    #allocation3 [shape = 's32[2]{0}', space=sflag, size = 0x8, scoped, tag = 'scoped memory for tpu_custom_call.1']
    %11 = vsyncpa [#allocation3], 0
    %s12 = scalar_lea.sflag [#allocation3], 1
    %13 = vsyncpa %s12, 0
    loop: start=0, step=1, limit=4
    $region2: #{tpu_custom_call.1} parent=1 // loop_pre_header
      _
    $region3: #{tpu_custom_call.1} parent=1 // loop_header
      %s15 = sphi 0, %s19
      %p16 = scmp.ge.s32.totalorder %s15, 4
      %s25 = sphi 0, %s27
      %s28 = sphi 0, %s25
      %s29 = sphi 0, %s28
      %s45 = sphi 0, %s29
      %s49 = sphi 0, %s49
      %s51 = sphi 0, %s49
      %s52 = sphi 0, %s51
      %s66 = sphi 0, %s52
      %s70 = sphi 0, %s70
      %s72 = sphi 0, %s70
      %s73 = sphi 0, %s72
      %s87 = sphi 0, %s73
      %s91 = sphi 0, %s91
      %s93 = sphi 0, %s91
      %s94 = sphi 0, %s93
      %s108 = sphi 0, %s94
      %s112 = sphi 0, %s112
      %s114 = sphi 0, %s112
      %s115 = sphi 0, %s114
      %s129 = sphi 0, %s115
      %s135 = sphi 0, %s137
      %s138 = sphi 0, %s135
      %s139 = sphi 0, %s138
      %s155 = sphi 0, %s139
      %s161 = sphi 0, %s163
      %s164 = sphi 0, %s161
      %s165 = sphi 0, %s164
      %s181 = sphi 0, %s165
    $region4: #{tpu_custom_call.1} parent=1 // loop_header_branch
      %18 = sbr.rel (%p16) target = $region8
    $region5: #{tpu_custom_call.1} parent=1 // loop_body
      %s20 = ssub.s32 %s15, 1
      %s21 = ssub.s32 %s15, 2
      %s22 = sadd.s32 %s15, 1
      %s23 = ssub.s32 %s15, %s22
      %p24 = scmp.eq.s32.totalorder %s23, 0
      %s26 = sadd.s32 %s25, 1
      %s27 = scalar_select %p24, %s25, %s26
      %p30 = pneg %p24
      %p31 = scmp.eq.s32.totalorder %s15, 1
      %p32 = por %p30, %p31
      %p33 = scmp.ne.s32.totalorder %s25, %s28
      %p34 = scmp.eq.s32.totalorder %s15, 0
      %p35 = por %p33, %p34
      %p36 = scmp.ne.s32.totalorder %s25, %s28
      %p37 = scmp.eq.s32.totalorder %s20, 1
      %p38 = por %p36, %p37
      %p39 = scmp.ne.s32.totalorder %s28, %s29
      %p40 = scmp.eq.s32.totalorder %s20, 0
      %p41 = por %p39, %p40
      %p42 = scmp.ne.s32.totalorder %s28, %s29
      %p43 = scmp.eq.s32.totalorder %s21, 1
      %p44 = por %p42, %p43
      %p46 = scmp.ne.s32.totalorder %s29, %s45
      %p47 = scmp.eq.s32.totalorder %s21, 0
      %p48 = por %p46, %p47
      %s50 = sadd.s32 %s49, 1
      %p53 = scmp.eq.s32.totalorder %s15, 1
      %p54 = scmp.ne.s32.totalorder %s49, %s51
      %p55 = scmp.eq.s32.totalorder %s15, 0
      %p56 = por %p54, %p55
      %p57 = scmp.ne.s32.totalorder %s49, %s51
      %p58 = scmp.eq.s32.totalorder %s20, 1
      %p59 = por %p57, %p58
      %p60 = scmp.ne.s32.totalorder %s51, %s52
      %p61 = scmp.eq.s32.totalorder %s20, 0
      %p62 = por %p60, %p61
      %p63 = scmp.ne.s32.totalorder %s51, %s52
      %p64 = scmp.eq.s32.totalorder %s21, 1
      %p65 = por %p63, %p64
      %p67 = scmp.ne.s32.totalorder %s52, %s66
      %p68 = scmp.eq.s32.totalorder %s21, 0
      %p69 = por %p67, %p68
      %s71 = sadd.s32 %s70, 1
      %p74 = scmp.eq.s32.totalorder %s15, 1
      %p75 = scmp.ne.s32.totalorder %s70, %s72
      %p76 = scmp.eq.s32.totalorder %s15, 0
      %p77 = por %p75, %p76
      %p78 = scmp.ne.s32.totalorder %s70, %s72
      %p79 = scmp.eq.s32.totalorder %s20, 1
      %p80 = por %p78, %p79
      %p81 = scmp.ne.s32.totalorder %s72, %s73
      %p82 = scmp.eq.s32.totalorder %s20, 0
      %p83 = por %p81, %p82
      %p84 = scmp.ne.s32.totalorder %s72, %s73
      %p85 = scmp.eq.s32.totalorder %s21, 1
      %p86 = por %p84, %p85
      %p88 = scmp.ne.s32.totalorder %s73, %s87
      %p89 = scmp.eq.s32.totalorder %s21, 0
      %p90 = por %p88, %p89
      %s92 = sadd.s32 %s91, 1
      %p95 = scmp.eq.s32.totalorder %s15, 1
      %p96 = scmp.ne.s32.totalorder %s91, %s93
      %p97 = scmp.eq.s32.totalorder %s15, 0
      %p98 = por %p96, %p97
      %p99 = scmp.ne.s32.totalorder %s91, %s93
      %p100 = scmp.eq.s32.totalorder %s20, 1
      %p101 = por %p99, %p100
      %p102 = scmp.ne.s32.totalorder %s93, %s94
      %p103 = scmp.eq.s32.totalorder %s20, 0
      %p104 = por %p102, %p103
      %p105 = scmp.ne.s32.totalorder %s93, %s94
      %p106 = scmp.eq.s32.totalorder %s21, 1
      %p107 = por %p105, %p106
      %p109 = scmp.ne.s32.totalorder %s94, %s108
      %p110 = scmp.eq.s32.totalorder %s21, 0
      %p111 = por %p109, %p110
      %s113 = sadd.s32 %s112, 1
      %p116 = scmp.eq.s32.totalorder %s15, 1
      %p117 = scmp.ne.s32.totalorder %s112, %s114
      %p118 = scmp.eq.s32.totalorder %s15, 0
      %p119 = por %p117, %p118
      %p120 = scmp.ne.s32.totalorder %s112, %s114
      %p121 = scmp.eq.s32.totalorder %s20, 1
      %p122 = por %p120, %p121
      %p123 = scmp.ne.s32.totalorder %s114, %s115
      %p124 = scmp.eq.s32.totalorder %s20, 0
      %p125 = por %p123, %p124
      %p126 = scmp.ne.s32.totalorder %s114, %s115
      %p127 = scmp.eq.s32.totalorder %s21, 1
      %p128 = por %p126, %p127
      %p130 = scmp.ne.s32.totalorder %s115, %s129
      %p131 = scmp.eq.s32.totalorder %s21, 0
      %p132 = por %p130, %p131
      %s133 = ssub.s32 %s15, %s22
      %p134 = scmp.eq.s32.totalorder %s133, 0
      %s136 = sadd.s32 %s135, 1
      %s137 = scalar_select %p134, %s135, %s136
      %p140 = pneg %p134
      %p141 = scmp.eq.s32.totalorder %s15, 1
      %p142 = por %p140, %p141
      %p143 = scmp.ne.s32.totalorder %s135, %s138
      %p144 = scmp.eq.s32.totalorder %s15, 0
      %p145 = por %p143, %p144
      %p146 = scmp.ne.s32.totalorder %s135, %s138
      %p147 = scmp.eq.s32.totalorder %s20, 1
      %p148 = por %p146, %p147
      %p149 = scmp.ne.s32.totalorder %s138, %s139
      %p150 = scmp.eq.s32.totalorder %s20, 0
      %p151 = por %p149, %p150
      %p152 = scmp.ne.s32.totalorder %s138, %s139
      %p153 = scmp.eq.s32.totalorder %s21, 1
      %p154 = por %p152, %p153
      %p156 = scmp.ne.s32.totalorder %s139, %s155
      %p157 = scmp.eq.s32.totalorder %s21, 0
      %p158 = por %p156, %p157
      %s159 = ssub.s32 %s15, %s22
      %p160 = scmp.eq.s32.totalorder %s159, 0
      %s162 = sadd.s32 %s161, 1
      %s163 = scalar_select %p160, %s161, %s162
      %p166 = pneg %p160
      %p167 = scmp.eq.s32.totalorder %s15, 1
      %p168 = por %p166, %p167
      %p169 = scmp.ne.s32.totalorder %s161, %s164
      %p170 = scmp.eq.s32.totalorder %s15, 0
      %p171 = por %p169, %p170
      %p172 = scmp.ne.s32.totalorder %s161, %s164
      %p173 = scmp.eq.s32.totalorder %s20, 1
      %p174 = por %p172, %p173
      %p175 = scmp.ne.s32.totalorder %s164, %s165
      %p176 = scmp.eq.s32.totalorder %s20, 0
      %p177 = por %p175, %p176
      %p178 = scmp.ne.s32.totalorder %s164, %s165
      %p179 = scmp.eq.s32.totalorder %s21, 1
      %p180 = por %p178, %p179
      %p182 = scmp.ne.s32.totalorder %s165, %s181
      %p183 = scmp.eq.s32.totalorder %s21, 0
      %p184 = por %p182, %p183
      %p185 = scmp.le.s32.totalorder 1, %s15
      %p186 = scmp.lt.s32.totalorder %s15, 3
      %p187 = pnand %p185, %p186
      %p188 = pneg %p187
      // Predicated region
      $region9: #{tpu_custom_call.1} parent=5 // pred_check
        _
      $region10: #{tpu_custom_call.1} parent=5 // pred_check_branch
        %190 = sbr.rel (%p187) target = $region12
      $region11: #{tpu_custom_call.1} parent=5 // pred_region
        %s191 = ssub.s32 %s15, 1
        // Predicated region
        $region13: #{tpu_custom_call.1} parent=11 // pred_check
          %p192 = pneg %p62
        $region14: #{tpu_custom_call.1} parent=11 // pred_check_branch
          %194 = sbr.rel (%p192) target = $region16
        $region15: #{tpu_custom_call.1} parent=11 // pred_region
          _
        $region16: #{tpu_custom_call.1} parent=11 // pred_fallthru
          _
        // Predicated region
        $region17: #{tpu_custom_call.1} parent=11 // pred_check
          %p195 = pneg %p83
        $region18: #{tpu_custom_call.1} parent=11 // pred_check_branch
          %197 = sbr.rel (%p195) target = $region20
        $region19: #{tpu_custom_call.1} parent=11 // pred_region
          _
        $region20: #{tpu_custom_call.1} parent=11 // pred_fallthru
          _
        // Predicated region
        $region21: #{tpu_custom_call.1} parent=11 // pred_check
          %p198 = pneg %p104
        $region22: #{tpu_custom_call.1} parent=11 // pred_check_branch
          %200 = sbr.rel (%p198) target = $region24
        $region23: #{tpu_custom_call.1} parent=11 // pred_region
          _
        $region24: #{tpu_custom_call.1} parent=11 // pred_fallthru
          _
        // Predicated region
        $region25: #{tpu_custom_call.1} parent=11 // pred_check
          %p201 = pneg %p125
        $region26: #{tpu_custom_call.1} parent=11 // pred_check_branch
          %203 = sbr.rel (%p201) target = $region28
        $region27: #{tpu_custom_call.1} parent=11 // pred_region
          _
        $region28: #{tpu_custom_call.1} parent=11 // pred_fallthru
          _
      $region12: #{tpu_custom_call.1} parent=5 // pred_fallthru
        _
      %p204 = scmp.lt.s32.totalorder %s15, 2
      // Predicated region
      $region29: #{tpu_custom_call.1} parent=5 // pred_check
        %p205 = pneg %p204
      $region30: #{tpu_custom_call.1} parent=5 // pred_check_branch
        %207 = sbr.rel (%p205) target = $region32
      $region31: #{tpu_custom_call.1} parent=5 // pred_region
        // Predicated region
        $region33: #{tpu_custom_call.1} parent=31 // pred_check
          %p208 = pneg %p35
        $region34: #{tpu_custom_call.1} parent=31 // pred_check_branch
          %210 = sbr.rel (%p208) target = $region36
        $region35: #{tpu_custom_call.1} parent=31 // pred_region
          %s211 = smul.u32 32, %s15
          %p212 = scmp.lt.s32.totalorder %s211, 63
          %s213 = scalar_select %p212, %s211, 63
          %s214 = smul.addr %s213, 2
          %s215 = smul.addr %s214, 4
          %s216 = scalar_lea.vmem %s0, %s215
          %s217 = smul.u32 32, %s15
        $region36: #{tpu_custom_call.1} parent=31 // pred_fallthru
          _
        // Predicated region
        $region37: #{tpu_custom_call.1} parent=31 // pred_check
          %p218 = pneg %p145
        $region38: #{tpu_custom_call.1} parent=31 // pred_check_branch
          %220 = sbr.rel (%p218) target = $region40
        $region39: #{tpu_custom_call.1} parent=31 // pred_region
          %s221 = smul.u32 32, %s15
          %p222 = scmp.lt.s32.totalorder %s221, 63
          %s223 = scalar_select %p222, %s221, 63
          %s224 = smul.addr %s223, 8
          %s225 = scalar_lea.vmem %s5, %s224
          %s226 = smul.u32 32, %s15
        $region40: #{tpu_custom_call.1} parent=31 // pred_fallthru
          _
      $region32: #{tpu_custom_call.1} parent=5 // pred_fallthru
        _
      %p227 = scmp.le.s32.totalorder 1, %s15
      %p228 = scmp.lt.s32.totalorder %s15, 3
      %p229 = pnand %p227, %p228
      %p230 = pneg %p229
      // Predicated region
      $region41: #{tpu_custom_call.1} parent=5 // pred_check
        _
      $region42: #{tpu_custom_call.1} parent=5 // pred_check_branch
        %232 = sbr.rel (%p229) target = $region44
      $region43: #{tpu_custom_call.1} parent=5 // pred_region
        %s233 = ssub.s32 %s15, 1
        %s234 = smul.u32 32, %s20
        %p235 = scmp.lt.s32.totalorder %s234, 63
        %s236 = scalar_select %p235, %s234, 63
        %s237 = smul.addr %s236, 2
        %s238 = smul.addr %s237, 4
        %s239 = scalar_lea.vmem %s0, %s238
        %p240 = pneg %p41
        %p241 = pneg %p38
        %p242 = pneg %p62
        %p243 = pneg %p59
        %p244 = pneg %p83
        %p245 = pneg %p80
        %p246 = pneg %p104
        %p247 = pneg %p101
        %p248 = pneg %p125
        %p249 = pneg %p122
        %s250 = smul.u32 32, %s20
        %p251 = scmp.lt.s32.totalorder %s250, 63
        %s252 = scalar_select %p251, %s250, 63
        %s253 = smul.addr %s252, 8
        %s254 = scalar_lea.vmem %s5, %s253
        %p255 = pneg %p151
        %p256 = pneg %p148
        %p257 = pneg %p177
        %p258 = pneg %p174
        %s259 = sand.u32 %s164, 1
        %s260 = scalar_lea.sflag [#allocation3], %s259
        %s261 = sand.u32 %s164, 1
        %s262 = smul.addr %s261, 256
        %s263 = scalar_lea.vmem [#allocation2], %s262
        %s264 = smul.u32 32, %s20
        %p265 = scmp.lt.s32.totalorder %s264, 63
        %s266 = scalar_select %p265, %s264, 63
        %s267 = smul.addr %s266, 2
        %s268 = smul.addr %s267, 4
        %s269 = scalar_lea.vmem %s0, %s268
        %s270 = smul.u32 32, %s20
        %s271 = smul.u32 32, %s20
        %p272 = scmp.lt.s32.totalorder %s271, 63
        %s273 = scalar_select %p272, %s271, 63
        %s274 = smul.addr %s273, 8
        %s275 = scalar_lea.vmem %s5, %s274
        %s276 = smul.u32 32, %s20
        %s277 = smul.u32 32, %s20
        %v279 = vld [vmem:[%s269] sm:$0xff]
        %v280 = vld [vmem:[%s269 + $0x8] sm:$0xff]
        %v281 = vld [vmem:[%s269 + $0x10] sm:$0xff]
        %v282 = vld [vmem:[%s269 + $0x18] sm:$0xff]
        %v283 = vld [vmem:[%s269 + $0x20] sm:$0xff]
        %v284 = vld [vmem:[%s269 + $0x28] sm:$0xff]
        %v285 = vld [vmem:[%s269 + $0x30] sm:$0xff]
        %v286 = vld [vmem:[%s269 + $0x38] sm:$0xff]
        %v287 = vld [vmem:[%s269 + $0x40] sm:$0xff]
        %v288 = vld [vmem:[%s269 + $0x48] sm:$0xff]
        %v289 = vld [vmem:[%s269 + $0x50] sm:$0xff]
        %v290 = vld [vmem:[%s269 + $0x58] sm:$0xff]
        %v291 = vld [vmem:[%s269 + $0x60] sm:$0xff]
        %v292 = vld [vmem:[%s269 + $0x68] sm:$0xff]
        %v293 = vld [vmem:[%s269 + $0x70] sm:$0xff]
        %v294 = vld [vmem:[%s269 + $0x78] sm:$0xff]
        %v295 = vld [vmem:[%s269 + $0x80] sm:$0xff]
        %v296 = vld [vmem:[%s269 + $0x88] sm:$0xff]
        %v297 = vld [vmem:[%s269 + $0x90] sm:$0xff]
        %v298 = vld [vmem:[%s269 + $0x98] sm:$0xff]
        %v299 = vld [vmem:[%s269 + $0xa0] sm:$0xff]
        %v300 = vld [vmem:[%s269 + $0xa8] sm:$0xff]
        %v301 = vld [vmem:[%s269 + $0xb0] sm:$0xff]
        %v302 = vld [vmem:[%s269 + $0xb8] sm:$0xff]
        %v303 = vld [vmem:[%s269 + $0xc0] sm:$0xff]
        %v304 = vld [vmem:[%s269 + $0xc8] sm:$0xff]
        %v305 = vld [vmem:[%s269 + $0xd0] sm:$0xff]
        %v306 = vld [vmem:[%s269 + $0xd8] sm:$0xff]
        %v307 = vld [vmem:[%s269 + $0xe0] sm:$0xff]
        %v308 = vld [vmem:[%s269 + $0xe8] sm:$0xff]
        %v309 = vld [vmem:[%s269 + $0xf0] sm:$0xff]
        %v310 = vld [vmem:[%s269 + $0xf8] sm:$0xff]
        %v311 = vld [vmem:[%s1] sm:$0xf]
        %v312 = vld [vmem:[%s1 + $0x4] sm:$0xf]
        %v313 = vld [vmem:[%s1 + $0x8] sm:$0xf]
        %v314 = vld [vmem:[%s1 + $0xc] sm:$0xf]
        %v315 = vld [vmem:[%s1 + $0x10] sm:$0xf]
        %v316 = vld [vmem:[%s1 + $0x14] sm:$0xf]
        %v317 = vld [vmem:[%s1 + $0x18] sm:$0xf]
        %v318 = vld [vmem:[%s1 + $0x1c] sm:$0xf]
        %v319 = vld [vmem:[%s1 + $0x20] sm:$0xf]
        %v320 = vld [vmem:[%s1 + $0x24] sm:$0xf]
        %v321 = vld [vmem:[%s1 + $0x28] sm:$0xf]
        %v322 = vld [vmem:[%s1 + $0x2c] sm:$0xf]
        %v323 = vld [vmem:[%s1 + $0x30] sm:$0xf]
        %v324 = vld [vmem:[%s1 + $0x34] sm:$0xf]
        %v325 = vld [vmem:[%s1 + $0x38] sm:$0xf]
        %v326 = vld [vmem:[%s1 + $0x3c] sm:$0xf]
        %v327 = vld [vmem:[%s1 + $0x40] sm:$0xf]
        %v328 = vld [vmem:[%s1 + $0x44] sm:$0xf]
        %v329 = vld [vmem:[%s2] sm:$0x1]
        %v331 = vlaneseq
        %v332 = vshrl.u32 %v331, 7
        %v333 = vsub.s32 0, %v332
        %v334 = vrot.slane %v329, %v333
        %v368 = vunpack.c.l.b16 %v279
        %v369 = vunpack.c.h.b16 %v279
        %v370 = vunpack.c.l.b16 %v280
        %v371 = vunpack.c.h.b16 %v280
        %v372 = vunpack.c.l.b16 %v281
        %v373 = vunpack.c.h.b16 %v281
        %v374 = vunpack.c.l.b16 %v282
        %v375 = vunpack.c.h.b16 %v282
        %v376 = vunpack.c.l.b16 %v283
        %v377 = vunpack.c.h.b16 %v283
        %v378 = vunpack.c.l.b16 %v284
        %v379 = vunpack.c.h.b16 %v284
        %v380 = vunpack.c.l.b16 %v285
        %v381 = vunpack.c.h.b16 %v285
        %v382 = vunpack.c.l.b16 %v286
        %v383 = vunpack.c.h.b16 %v286
        %v384 = vunpack.c.l.b16 %v287
        %v385 = vunpack.c.h.b16 %v287
        %v386 = vunpack.c.l.b16 %v288
        %v387 = vunpack.c.h.b16 %v288
        %v388 = vunpack.c.l.b16 %v289
        %v389 = vunpack.c.h.b16 %v289
        %v390 = vunpack.c.l.b16 %v290
        %v391 = vunpack.c.h.b16 %v290
        %v392 = vunpack.c.l.b16 %v291
        %v393 = vunpack.c.h.b16 %v291
        %v394 = vunpack.c.l.b16 %v292
        %v395 = vunpack.c.h.b16 %v292
        %v396 = vunpack.c.l.b16 %v293
        %v397 = vunpack.c.h.b16 %v293
        %v398 = vunpack.c.l.b16 %v294
        %v399 = vunpack.c.h.b16 %v294
        %v400 = vunpack.c.l.b16 %v295
        %v401 = vunpack.c.h.b16 %v295
        %v402 = vunpack.c.l.b16 %v296
        %v403 = vunpack.c.h.b16 %v296
        %v404 = vunpack.c.l.b16 %v297
        %v405 = vunpack.c.h.b16 %v297
        %v406 = vunpack.c.l.b16 %v298
        %v407 = vunpack.c.h.b16 %v298
        %v408 = vunpack.c.l.b16 %v299
        %v409 = vunpack.c.h.b16 %v299
        %v410 = vunpack.c.l.b16 %v300
        %v411 = vunpack.c.h.b16 %v300
        %v412 = vunpack.c.l.b16 %v301
        %v413 = vunpack.c.h.b16 %v301
        %v414 = vunpack.c.l.b16 %v302
        %v415 = vunpack.c.h.b16 %v302
        %v416 = vunpack.c.l.b16 %v303
        %v417 = vunpack.c.h.b16 %v303
        %v418 = vunpack.c.l.b16 %v304
        %v419 = vunpack.c.h.b16 %v304
        %v420 = vunpack.c.l.b16 %v305
        %v421 = vunpack.c.h.b16 %v305
        %v422 = vunpack.c.l.b16 %v306
        %v423 = vunpack.c.h.b16 %v306
        %v424 = vunpack.c.l.b16 %v307
        %v425 = vunpack.c.h.b16 %v307
        %v426 = vunpack.c.l.b16 %v308
        %v427 = vunpack.c.h.b16 %v308
        %v428 = vunpack.c.l.b16 %v309
        %v429 = vunpack.c.h.b16 %v309
        %v430 = vunpack.c.l.b16 %v310
        %v431 = vunpack.c.h.b16 %v310
        %v432 = vpack.c.b16 %v370, %v368
        %v433 = vpack.c.b16 %v371, %v369
        %v434 = vpack.c.b16 %v374, %v372
        %v435 = vpack.c.b16 %v375, %v373
        %v436 = vpack.c.b16 %v378, %v376
        %v437 = vpack.c.b16 %v379, %v377
        %v438 = vpack.c.b16 %v382, %v380
        %v439 = vpack.c.b16 %v383, %v381
        %v440 = vpack.c.b16 %v386, %v384
        %v441 = vpack.c.b16 %v387, %v385
        %v442 = vpack.c.b16 %v390, %v388
        %v443 = vpack.c.b16 %v391, %v389
        %v444 = vpack.c.b16 %v394, %v392
        %v445 = vpack.c.b16 %v395, %v393
        %v446 = vpack.c.b16 %v398, %v396
        %v447 = vpack.c.b16 %v399, %v397
        %v448 = vpack.c.b16 %v402, %v400
        %v449 = vpack.c.b16 %v403, %v401
        %v450 = vpack.c.b16 %v406, %v404
        %v451 = vpack.c.b16 %v407, %v405
        %v452 = vpack.c.b16 %v410, %v408
        %v453 = vpack.c.b16 %v411, %v409
        %v454 = vpack.c.b16 %v414, %v412
        %v455 = vpack.c.b16 %v415, %v413
        %v456 = vpack.c.b16 %v418, %v416
        %v457 = vpack.c.b16 %v419, %v417
        %v458 = vpack.c.b16 %v422, %v420
        %v459 = vpack.c.b16 %v423, %v421
        %v460 = vpack.c.b16 %v426, %v424
        %v461 = vpack.c.b16 %v427, %v425
        %v462 = vpack.c.b16 %v430, %v428
        %v463 = vpack.c.b16 %v431, %v429
        %v498 = vunpack.c.l.b16 %v311
        %v499 = vunpack.c.l.b16 %v312
        %v500 = vunpack.c.l.b16 %v313
        %v501 = vunpack.c.l.b16 %v314
        %v502 = vunpack.c.l.b16 %v315
        %v503 = vunpack.c.l.b16 %v316
        %v504 = vunpack.c.l.b16 %v317
        %v505 = vunpack.c.l.b16 %v318
        %v506 = vunpack.c.l.b16 %v319
        %v507 = vunpack.c.l.b16 %v320
        %v508 = vunpack.c.l.b16 %v321
        %v509 = vunpack.c.l.b16 %v322
        %v510 = vunpack.c.l.b16 %v323
        %v511 = vunpack.c.l.b16 %v324
        %v512 = vunpack.c.l.b16 %v325
        %v513 = vunpack.c.l.b16 %v326
        %v514 = vunpack.c.l.b16 %v327
        %v515 = vunpack.c.l.b16 %v328
        %v516 = vpack.c.b16 %v499, %v498
        %v517 = vpack.c.b16 %v501, %v500
        %v518 = vpack.c.b16 %v503, %v502
        %v519 = vpack.c.b16 %v505, %v504
        %v520 = vpack.c.b16 %v507, %v506
        %v521 = vpack.c.b16 %v509, %v508
        %v522 = vpack.c.b16 %v511, %v510
        %v523 = vpack.c.b16 %v513, %v512
        %v524 = vpack.c.b16 %v515, %v514
        %vm534 = vcmask 130048
        %v536 = vsel %vm534, %v433, 0
        %v539 = vsel %vm534, %v435, 0
        %v542 = vsel %vm534, %v437, 0
        %v545 = vsel %vm534, %v439, 0
        %v548 = vsel %vm534, %v441, 0
        %v551 = vsel %vm534, %v443, 0
        %v554 = vsel %vm534, %v445, 0
        %v557 = vsel %vm534, %v447, 0
        %v560 = vsel %vm534, %v449, 0
        %v563 = vsel %vm534, %v451, 0
        %v566 = vsel %vm534, %v453, 0
        %v569 = vsel %vm534, %v455, 0
        %v572 = vsel %vm534, %v457, 0
        %v575 = vsel %vm534, %v459, 0
        %v578 = vsel %vm534, %v461, 0
        %v581 = vsel %vm534, %v463, 0
        %583 = vmatprep.subr.bf16.mxu0 0
        %584 = vmatpush1.bf16.msra.mxu0 %v516
        %585 = vmatprep.subr.bf16.mxu0 0
        %586 = vmatpush1.bf16.msra.mxu0 %v517
        %587 = vmatprep.subr.bf16.mxu0 0
        %588 = vmatpush1.bf16.msra.mxu0 %v518
        %589 = vmatprep.subr.bf16.mxu0 0
        %590 = vmatpush1.bf16.msra.mxu0 %v519
        %591 = vmatprep.subr.bf16.mxu0 0
        %592 = vmatpush1.bf16.msra.mxu0 %v520
        %593 = vmatprep.subr.bf16.mxu0 0
        %594 = vmatpush1.bf16.msra.mxu0 %v521
        %595 = vmatprep.subr.bf16.mxu0 0
        %596 = vmatpush1.bf16.msra.mxu0 %v522
        %597 = vmatprep.subr.bf16.mxu0 0
        %598 = vmatpush1.bf16.msra.mxu0 %v523
        %599 = vmatprep.subr.bf16.mxu0 0
        %600 = vmatpush1.bf16.msra.mxu0 %v524
        %601 = vmatprep.subr.bf16.mxu0 0
        %602 = vmatpush1.bf16.msra.mxu0 0
        %603 = vmatprep.subr.bf16.mxu0 0
        %604 = vmatpush1.bf16.msra.mxu0 0
        %605 = vmatprep.subr.bf16.mxu0 0
        %606 = vmatpush1.bf16.msra.mxu0 0
        %607 = vmatprep.subr.bf16.mxu0 0
        %608 = vmatpush1.bf16.msra.mxu0 0
        %609 = vmatprep.subr.bf16.mxu0 0
        %610 = vmatpush1.bf16.msra.mxu0 0
        %611 = vmatprep.subr.bf16.mxu0 0
        %612 = vmatpush1.bf16.msra.mxu0 0
        %613 = vmatprep.subr.bf16.mxu0 0
        %614 = vmatpush1.bf16.msra.mxu0 0
        %615 = vmatprep.mubr.bf16.mxu0 %v536
        %616 = vmatmul.mubr.bf16.gmra.mrb[0].mxu0 %v432
        %v617 = vpop.f32.mrb[0].mxu0
        %v618 = vadd.f32 %v334, %v617
        %v619 = vpop.f32.mrb[0].mxu0
        %v620 = vpop.f32.mrb[0].mxu0
        %v621 = vadd.f32 %v334, %v620
        %v622 = vpop.f32.mrb[0].mxu0
        %623 = vmatprep.mubr.bf16.mxu0 %v539
        %624 = vmatmul.mubr.bf16.gmra.mrb[0].mxu0 %v434
        %v625 = vpop.f32.mrb[0].mxu0
        %v626 = vadd.f32 %v334, %v625
        %v627 = vpop.f32.mrb[0].mxu0
        %v628 = vpop.f32.mrb[0].mxu0
        %v629 = vadd.f32 %v334, %v628
        %v630 = vpop.f32.mrb[0].mxu0
        %631 = vmatprep.mubr.bf16.mxu0 %v542
        %632 = vmatmul.mubr.bf16.gmra.mrb[0].mxu0 %v436
        %v633 = vpop.f32.mrb[0].mxu0
        %v634 = vadd.f32 %v334, %v633
        %v635 = vpop.f32.mrb[0].mxu0
        %v636 = vpop.f32.mrb[0].mxu0
        %v637 = vadd.f32 %v334, %v636
        %v638 = vpop.f32.mrb[0].mxu0
        %639 = vmatprep.mubr.bf16.mxu0 %v545
        %640 = vmatmul.mubr.bf16.gmra.mrb[0].mxu0 %v438
        %v641 = vpop.f32.mrb[0].mxu0
        %v642 = vadd.f32 %v334, %v641
        %v643 = vpop.f32.mrb[0].mxu0
        %v644 = vpop.f32.mrb[0].mxu0
        %v645 = vadd.f32 %v334, %v644
        %v646 = vpop.f32.mrb[0].mxu0
        %647 = vmatprep.mubr.bf16.mxu0 %v548
        %648 = vmatmul.mubr.bf16.gmra.mrb[0].mxu0 %v440
        %v649 = vpop.f32.mrb[0].mxu0
        %v650 = vadd.f32 %v334, %v649
        %v651 = vpop.f32.mrb[0].mxu0
        %v652 = vpop.f32.mrb[0].mxu0
        %v653 = vadd.f32 %v334, %v652
        %v654 = vpop.f32.mrb[0].mxu0
        %655 = vmatprep.mubr.bf16.mxu0 %v551
        %656 = vmatmul.mubr.bf16.gmra.mrb[0].mxu0 %v442
        %v657 = vpop.f32.mrb[0].mxu0
        %v658 = vadd.f32 %v334, %v657
        %v659 = vpop.f32.mrb[0].mxu0
        %v660 = vpop.f32.mrb[0].mxu0
        %v661 = vadd.f32 %v334, %v660
        %v662 = vpop.f32.mrb[0].mxu0
        %663 = vmatprep.mubr.bf16.mxu0 %v554
        %664 = vmatmul.mubr.bf16.gmra.mrb[0].mxu0 %v444
        %v665 = vpop.f32.mrb[0].mxu0
        %v666 = vadd.f32 %v334, %v665
        %v667 = vpop.f32.mrb[0].mxu0
        %v668 = vpop.f32.mrb[0].mxu0
        %v669 = vadd.f32 %v334, %v668
        %v670 = vpop.f32.mrb[0].mxu0
        %671 = vmatprep.mubr.bf16.mxu0 %v557
        %672 = vmatmul.mubr.bf16.gmra.mrb[0].mxu0 %v446
        %v673 = vpop.f32.mrb[0].mxu0
        %v674 = vadd.f32 %v334, %v673
        %v675 = vpop.f32.mrb[0].mxu0
        %v676 = vpop.f32.mrb[0].mxu0
        %v677 = vadd.f32 %v334, %v676
        %v678 = vpop.f32.mrb[0].mxu0
        %679 = vmatprep.mubr.bf16.mxu0 %v560
        %680 = vmatmul.mubr.bf16.gmra.mrb[0].mxu0 %v448
        %v681 = vpop.f32.mrb[0].mxu0
        %v682 = vadd.f32 %v334, %v681
        %v683 = vpop.f32.mrb[0].mxu0
        %v684 = vpop.f32.mrb[0].mxu0
        %v685 = vadd.f32 %v334, %v684
        %v686 = vpop.f32.mrb[0].mxu0
        %687 = vmatprep.mubr.bf16.mxu0 %v563
        %688 = vmatmul.mubr.bf16.gmra.mrb[0].mxu0 %v450
        %v689 = vpop.f32.mrb[0].mxu0
        %v690 = vadd.f32 %v334, %v689
        %v691 = vpop.f32.mrb[0].mxu0
        %v692 = vpop.f32.mrb[0].mxu0
        %v693 = vadd.f32 %v334, %v692
        %v694 = vpop.f32.mrb[0].mxu0
        %695 = vmatprep.mubr.bf16.mxu0 %v566
        %696 = vmatmul.mubr.bf16.gmra.mrb[0].mxu0 %v452
        %v697 = vpop.f32.mrb[0].mxu0
        %v698 = vadd.f32 %v334, %v697
        %v699 = vpop.f32.mrb[0].mxu0
        %v700 = vpop.f32.mrb[0].mxu0
        %v701 = vadd.f32 %v334, %v700
        %v702 = vpop.f32.mrb[0].mxu0
        %703 = vmatprep.mubr.bf16.mxu0 %v569
        %704 = vmatmul.mubr.bf16.gmra.mrb[0].mxu0 %v454
        %v705 = vpop.f32.mrb[0].mxu0
        %v706 = vadd.f32 %v334, %v705
        %v707 = vpop.f32.mrb[0].mxu0
        %v708 = vpop.f32.mrb[0].mxu0
        %v709 = vadd.f32 %v334, %v708
        %v710 = vpop.f32.mrb[0].mxu0
        %711 = vmatprep.mubr.bf16.mxu0 %v572
        %712 = vmatmul.mubr.bf16.gmra.mrb[0].mxu0 %v456
        %v713 = vpop.f32.mrb[0].mxu0
        %v714 = vadd.f32 %v334, %v713
        %v715 = vpop.f32.mrb[0].mxu0
        %v716 = vpop.f32.mrb[0].mxu0
        %v717 = vadd.f32 %v334, %v716
        %v718 = vpop.f32.mrb[0].mxu0
        %719 = vmatprep.mubr.bf16.mxu0 %v575
        %720 = vmatmul.mubr.bf16.gmra.mrb[0].mxu0 %v458
        %v721 = vpop.f32.mrb[0].mxu0
        %v722 = vadd.f32 %v334, %v721
        %v723 = vpop.f32.mrb[0].mxu0
        %v724 = vpop.f32.mrb[0].mxu0
        %v725 = vadd.f32 %v334, %v724
        %v726 = vpop.f32.mrb[0].mxu0
        %727 = vmatprep.mubr.bf16.mxu0 %v578
        %728 = vmatmul.mubr.bf16.gmra.mrb[0].mxu0 %v460
        %v729 = vpop.f32.mrb[0].mxu0
        %v730 = vadd.f32 %v334, %v729
        %v731 = vpop.f32.mrb[0].mxu0
        %v732 = vpop.f32.mrb[0].mxu0
        %v733 = vadd.f32 %v334, %v732
        %v734 = vpop.f32.mrb[0].mxu0
        %735 = vmatprep.mubr.bf16.mxu0 %v581
        %736 = vmatmul.mubr.bf16.gmra.mrb[0].mxu0 %v462
        %v737 = vpop.f32.mrb[0].mxu0
        %v738 = vadd.f32 %v334, %v737
        %v739 = vpop.f32.mrb[0].mxu0
        %v740 = vpop.f32.mrb[0].mxu0
        %v741 = vadd.f32 %v334, %v740
        %v742 = vpop.f32.mrb[0].mxu0
        %743 = vdwg.mxu0
        %v744 = vmax.f32 %v618, 0.0
        %v745 = vmax.f32 %v621, 0.0
        %v746 = vmax.f32 %v626, 0.0
        %v747 = vmax.f32 %v629, 0.0
        %v748 = vmax.f32 %v634, 0.0
        %v749 = vmax.f32 %v637, 0.0
        %v750 = vmax.f32 %v642, 0.0
        %v751 = vmax.f32 %v645, 0.0
        %v752 = vmax.f32 %v650, 0.0
        %v753 = vmax.f32 %v653, 0.0
        %v754 = vmax.f32 %v658, 0.0
        %v755 = vmax.f32 %v661, 0.0
        %v756 = vmax.f32 %v666, 0.0
        %v757 = vmax.f32 %v669, 0.0
        %v758 = vmax.f32 %v674, 0.0
        %v759 = vmax.f32 %v677, 0.0
        %v760 = vmax.f32 %v682, 0.0
        %v761 = vmax.f32 %v685, 0.0
        %v762 = vmax.f32 %v690, 0.0
        %v763 = vmax.f32 %v693, 0.0
        %v764 = vmax.f32 %v698, 0.0
        %v765 = vmax.f32 %v701, 0.0
        %v766 = vmax.f32 %v706, 0.0
        %v767 = vmax.f32 %v709, 0.0
        %v768 = vmax.f32 %v714, 0.0
        %v769 = vmax.f32 %v717, 0.0
        %v770 = vmax.f32 %v722, 0.0
        %v771 = vmax.f32 %v725, 0.0
        %v772 = vmax.f32 %v730, 0.0
        %v773 = vmax.f32 %v733, 0.0
        %v774 = vmax.f32 %v738, 0.0
        %v775 = vmax.f32 %v741, 0.0
        %v776 = vpack.c.bf16 %v745, %v744
        %v777 = vpack.c.bf16 %v747, %v746
        %v778 = vpack.c.bf16 %v749, %v748
        %v779 = vpack.c.bf16 %v751, %v750
        %v780 = vpack.c.bf16 %v753, %v752
        %v781 = vpack.c.bf16 %v755, %v754
        %v782 = vpack.c.bf16 %v757, %v756
        %v783 = vpack.c.bf16 %v759, %v758
        %v784 = vpack.c.bf16 %v761, %v760
        %v785 = vpack.c.bf16 %v763, %v762
        %v786 = vpack.c.bf16 %v765, %v764
        %v787 = vpack.c.bf16 %v767, %v766
        %v788 = vpack.c.bf16 %v769, %v768
        %v789 = vpack.c.bf16 %v771, %v770
        %v790 = vpack.c.bf16 %v773, %v772
        %v791 = vpack.c.bf16 %v775, %v774
        %v792 = vld [vmem:[%s3] sm:$0xf]
        %v793 = vld [vmem:[%s3 + $0x4] sm:$0xf]
        %v794 = vld [vmem:[%s4] sm:$0x1]
        %v796 = vlaneseq
        %v797 = vshrl.u32 %v796, 7
        %v798 = vsub.s32 0, %v797
        %v799 = vrot.slane %v794, %v798
        %v803 = vunpack.c.l.b16 %v792
        %v804 = vunpack.c.l.b16 %v793
        %v805 = vpack.c.b16 %v804, %v803
        %v808 = vsel %vm534, %v776, 0
        %v811 = vsel %vm534, %v777, 0
        %v814 = vsel %vm534, %v778, 0
        %v817 = vsel %vm534, %v779, 0
        %v820 = vsel %vm534, %v780, 0
        %v823 = vsel %vm534, %v781, 0
        %v826 = vsel %vm534, %v782, 0
        %v829 = vsel %vm534, %v783, 0
        %v832 = vsel %vm534, %v784, 0
        %v835 = vsel %vm534, %v785, 0
        %v838 = vsel %vm534, %v786, 0
        %v841 = vsel %vm534, %v787, 0
        %v844 = vsel %vm534, %v788, 0
        %v847 = vsel %vm534, %v789, 0
        %v850 = vsel %vm534, %v790, 0
        %v853 = vsel %vm534, %v791, 0
        %855 = vmatprep.subr.bf16.mxu0 0
        %856 = vmatpush1.bf16.msra.mxu0 %v805
        %857 = vmatprep.subr.bf16.mxu0 0
        %858 = vmatpush1.bf16.msra.mxu0 0
        %859 = vmatprep.subr.bf16.mxu0 0
        %860 = vmatpush1.bf16.msra.mxu0 0
        %861 = vmatprep.subr.bf16.mxu0 0
        %862 = vmatpush1.bf16.msra.mxu0 0
        %863 = vmatprep.subr.bf16.mxu0 0
        %864 = vmatpush1.bf16.msra.mxu0 0
        %865 = vmatprep.subr.bf16.mxu0 0
        %866 = vmatpush1.bf16.msra.mxu0 0
        %867 = vmatprep.subr.bf16.mxu0 0
        %868 = vmatpush1.bf16.msra.mxu0 0
        %869 = vmatprep.subr.bf16.mxu0 0
        %870 = vmatpush1.bf16.msra.mxu0 0
        %871 = vmatprep.subr.bf16.mxu0 0
        %872 = vmatpush1.bf16.msra.mxu0 0
        %873 = vmatprep.subr.bf16.mxu0 0
        %874 = vmatpush1.bf16.msra.mxu0 0
        %875 = vmatprep.subr.bf16.mxu0 0
        %876 = vmatpush1.bf16.msra.mxu0 0
        %877 = vmatprep.subr.bf16.mxu0 0
        %878 = vmatpush1.bf16.msra.mxu0 0
        %879 = vmatprep.subr.bf16.mxu0 0
        %880 = vmatpush1.bf16.msra.mxu0 0
        %881 = vmatprep.subr.bf16.mxu0 0
        %882 = vmatpush1.bf16.msra.mxu0 0
        %883 = vmatprep.subr.bf16.mxu0 0
        %884 = vmatpush1.bf16.msra.mxu0 0
        %885 = vmatprep.subr.bf16.mxu0 0
        %886 = vmatpush1.bf16.msra.mxu0 0
        %887 = vmatprep.mubr.bf16.mxu0 0
        %888 = vmatmul.mubr.bf16.gmra.mrb[0].mxu0 %v808
        %v889 = vpop.f32.mrb[0].mxu0
        %v890 = vadd.f32 %v799, %v889
        %v891 = vpop.f32.mrb[0].mxu0
        %v892 = vpop.f32.mrb[0].mxu0
        %v893 = vadd.f32 %v799, %v892
        %v894 = vpop.f32.mrb[0].mxu0
        %895 = vmatprep.mubr.bf16.mxu0 0
        %896 = vmatmul.mubr.bf16.gmra.mrb[0].mxu0 %v811
        %v897 = vpop.f32.mrb[0].mxu0
        %v898 = vadd.f32 %v799, %v897
        %v899 = vpop.f32.mrb[0].mxu0
        %v900 = vpop.f32.mrb[0].mxu0
        %v901 = vadd.f32 %v799, %v900
        %v902 = vpop.f32.mrb[0].mxu0
        %903 = vmatprep.mubr.bf16.mxu0 0
        %904 = vmatmul.mubr.bf16.gmra.mrb[0].mxu0 %v814
        %v905 = vpop.f32.mrb[0].mxu0
        %v906 = vadd.f32 %v799, %v905
        %v907 = vpop.f32.mrb[0].mxu0
        %v908 = vpop.f32.mrb[0].mxu0
        %v909 = vadd.f32 %v799, %v908
        %v910 = vpop.f32.mrb[0].mxu0
        %911 = vmatprep.mubr.bf16.mxu0 0
        %912 = vmatmul.mubr.bf16.gmra.mrb[0].mxu0 %v817
        %v913 = vpop.f32.mrb[0].mxu0
        %v914 = vadd.f32 %v799, %v913
        %v915 = vpop.f32.mrb[0].mxu0
        %v916 = vpop.f32.mrb[0].mxu0
        %v917 = vadd.f32 %v799, %v916
        %v918 = vpop.f32.mrb[0].mxu0
        %919 = vmatprep.mubr.bf16.mxu0 0
        %920 = vmatmul.mubr.bf16.gmra.mrb[0].mxu0 %v820
        %v921 = vpop.f32.mrb[0].mxu0
        %v922 = vadd.f32 %v799, %v921
        %v923 = vpop.f32.mrb[0].mxu0
        %v924 = vpop.f32.mrb[0].mxu0
        %v925 = vadd.f32 %v799, %v924
        %v926 = vpop.f32.mrb[0].mxu0
        %927 = vmatprep.mubr.bf16.mxu0 0
        %928 = vmatmul.mubr.bf16.gmra.mrb[0].mxu0 %v823
        %v929 = vpop.f32.mrb[0].mxu0
        %v930 = vadd.f32 %v799, %v929
        %v931 = vpop.f32.mrb[0].mxu0
        %v932 = vpop.f32.mrb[0].mxu0
        %v933 = vadd.f32 %v799, %v932
        %v934 = vpop.f32.mrb[0].mxu0
        %935 = vmatprep.mubr.bf16.mxu0 0
        %936 = vmatmul.mubr.bf16.gmra.mrb[0].mxu0 %v826
        %v937 = vpop.f32.mrb[0].mxu0
        %v938 = vadd.f32 %v799, %v937
        %v939 = vpop.f32.mrb[0].mxu0
        %v940 = vpop.f32.mrb[0].mxu0
        %v941 = vadd.f32 %v799, %v940
        %v942 = vpop.f32.mrb[0].mxu0
        %943 = vmatprep.mubr.bf16.mxu0 0
        %944 = vmatmul.mubr.bf16.gmra.mrb[0].mxu0 %v829
        %v945 = vpop.f32.mrb[0].mxu0
        %v946 = vadd.f32 %v799, %v945
        %v947 = vpop.f32.mrb[0].mxu0
        %v948 = vpop.f32.mrb[0].mxu0
        %v949 = vadd.f32 %v799, %v948
        %v950 = vpop.f32.mrb[0].mxu0
        %951 = vmatprep.mubr.bf16.mxu0 0
        %952 = vmatmul.mubr.bf16.gmra.mrb[0].mxu0 %v832
        %v953 = vpop.f32.mrb[0].mxu0
        %v954 = vadd.f32 %v799, %v953
        %v955 = vpop.f32.mrb[0].mxu0
        %v956 = vpop.f32.mrb[0].mxu0
        %v957 = vadd.f32 %v799, %v956
        %v958 = vpop.f32.mrb[0].mxu0
        %959 = vmatprep.mubr.bf16.mxu0 0
        %960 = vmatmul.mubr.bf16.gmra.mrb[0].mxu0 %v835
        %v961 = vpop.f32.mrb[0].mxu0
        %v962 = vadd.f32 %v799, %v961
        %v963 = vpop.f32.mrb[0].mxu0
        %v964 = vpop.f32.mrb[0].mxu0
        %v965 = vadd.f32 %v799, %v964
        %v966 = vpop.f32.mrb[0].mxu0
        %967 = vmatprep.mubr.bf16.mxu0 0
        %968 = vmatmul.mubr.bf16.gmra.mrb[0].mxu0 %v838
        %v969 = vpop.f32.mrb[0].mxu0
        %v970 = vadd.f32 %v799, %v969
        %v971 = vpop.f32.mrb[0].mxu0
        %v972 = vpop.f32.mrb[0].mxu0
        %v973 = vadd.f32 %v799, %v972
        %v974 = vpop.f32.mrb[0].mxu0
        %975 = vmatprep.mubr.bf16.mxu0 0
        %976 = vmatmul.mubr.bf16.gmra.mrb[0].mxu0 %v841
        %v977 = vpop.f32.mrb[0].mxu0
        %v978 = vadd.f32 %v799, %v977
        %v979 = vpop.f32.mrb[0].mxu0
        %v980 = vpop.f32.mrb[0].mxu0
        %v981 = vadd.f32 %v799, %v980
        %v982 = vpop.f32.mrb[0].mxu0
        %983 = vmatprep.mubr.bf16.mxu0 0
        %984 = vmatmul.mubr.bf16.gmra.mrb[0].mxu0 %v844
        %v985 = vpop.f32.mrb[0].mxu0
        %v986 = vadd.f32 %v799, %v985
        %v987 = vpop.f32.mrb[0].mxu0
        %v988 = vpop.f32.mrb[0].mxu0
        %v989 = vadd.f32 %v799, %v988
        %v990 = vpop.f32.mrb[0].mxu0
        %991 = vmatprep.mubr.bf16.mxu0 0
        %992 = vmatmul.mubr.bf16.gmra.mrb[0].mxu0 %v847
        %v993 = vpop.f32.mrb[0].mxu0
        %v994 = vadd.f32 %v799, %v993
        %v995 = vpop.f32.mrb[0].mxu0
        %v996 = vpop.f32.mrb[0].mxu0
        %v997 = vadd.f32 %v799, %v996
        %v998 = vpop.f32.mrb[0].mxu0
        %999 = vmatprep.mubr.bf16.mxu0 0
        %1000 = vmatmul.mubr.bf16.gmra.mrb[0].mxu0 %v850
        %v1001 = vpop.f32.mrb[0].mxu0
        %v1002 = vadd.f32 %v799, %v1001
        %v1003 = vpop.f32.mrb[0].mxu0
        %v1004 = vpop.f32.mrb[0].mxu0
        %v1005 = vadd.f32 %v799, %v1004
        %v1006 = vpop.f32.mrb[0].mxu0
        %1007 = vmatprep.mubr.bf16.mxu0 0
        %1008 = vmatmul.mubr.bf16.gmra.mrb[0].mxu0 %v853
        %v1009 = vpop.f32.mrb[0].mxu0
        %v1010 = vadd.f32 %v799, %v1009
        %v1011 = vpop.f32.mrb[0].mxu0
        %v1012 = vpop.f32.mrb[0].mxu0
        %v1013 = vadd.f32 %v799, %v1012
        %v1014 = vpop.f32.mrb[0].mxu0
        %1015 = vdwg.mxu0
        %v1016 = vld [vmem:[%s275] sm:$0xff]
        %v1017 = vld [vmem:[%s275 + $0x8] sm:$0xff]
        %v1018 = vld [vmem:[%s275 + $0x10] sm:$0xff]
        %v1019 = vld [vmem:[%s275 + $0x18] sm:$0xff]
        %v1020 = vld [vmem:[%s275 + $0x20] sm:$0xff]
        %v1021 = vld [vmem:[%s275 + $0x28] sm:$0xff]
        %v1022 = vld [vmem:[%s275 + $0x30] sm:$0xff]
        %v1023 = vld [vmem:[%s275 + $0x38] sm:$0xff]
        %v1024 = vld [vmem:[%s275 + $0x40] sm:$0xff]
        %v1025 = vld [vmem:[%s275 + $0x48] sm:$0xff]
        %v1026 = vld [vmem:[%s275 + $0x50] sm:$0xff]
        %v1027 = vld [vmem:[%s275 + $0x58] sm:$0xff]
        %v1028 = vld [vmem:[%s275 + $0x60] sm:$0xff]
        %v1029 = vld [vmem:[%s275 + $0x68] sm:$0xff]
        %v1030 = vld [vmem:[%s275 + $0x70] sm:$0xff]
        %v1031 = vld [vmem:[%s275 + $0x78] sm:$0xff]
        %v1032 = vld [vmem:[%s275 + $0x80] sm:$0xff]
        %v1033 = vld [vmem:[%s275 + $0x88] sm:$0xff]
        %v1034 = vld [vmem:[%s275 + $0x90] sm:$0xff]
        %v1035 = vld [vmem:[%s275 + $0x98] sm:$0xff]
        %v1036 = vld [vmem:[%s275 + $0xa0] sm:$0xff]
        %v1037 = vld [vmem:[%s275 + $0xa8] sm:$0xff]
        %v1038 = vld [vmem:[%s275 + $0xb0] sm:$0xff]
        %v1039 = vld [vmem:[%s275 + $0xb8] sm:$0xff]
        %v1040 = vld [vmem:[%s275 + $0xc0] sm:$0xff]
        %v1041 = vld [vmem:[%s275 + $0xc8] sm:$0xff]
        %v1042 = vld [vmem:[%s275 + $0xd0] sm:$0xff]
        %v1043 = vld [vmem:[%s275 + $0xd8] sm:$0xff]
        %v1044 = vld [vmem:[%s275 + $0xe0] sm:$0xff]
        %v1045 = vld [vmem:[%s275 + $0xe8] sm:$0xff]
        %v1046 = vld [vmem:[%s275 + $0xf0] sm:$0xff]
        %v1047 = vld [vmem:[%s275 + $0xf8] sm:$0xff]
        %1080 = vrot.lane.b32.xlu0 %v1016, 3
        %v1081 = vpop.permute.xlu0 %1080
        %1082 = vrot.lane.b32.xlu0 %v1017, 3
        %v1083 = vpop.permute.xlu0 %1082
        %1084 = vrot.lane.b32.xlu0 %v1018, 3
        %v1085 = vpop.permute.xlu0 %1084
        %1086 = vrot.lane.b32.xlu0 %v1019, 3
        %v1087 = vpop.permute.xlu0 %1086
        %1088 = vrot.lane.b32.xlu0 %v1020, 3
        %v1089 = vpop.permute.xlu0 %1088
        %1090 = vrot.lane.b32.xlu0 %v1021, 3
        %v1091 = vpop.permute.xlu0 %1090
        %1092 = vrot.lane.b32.xlu0 %v1022, 3
        %v1093 = vpop.permute.xlu0 %1092
        %1094 = vrot.lane.b32.xlu0 %v1023, 3
        %v1095 = vpop.permute.xlu0 %1094
        %1096 = vrot.lane.b32.xlu0 %v1024, 3
        %v1097 = vpop.permute.xlu0 %1096
        %1098 = vrot.lane.b32.xlu0 %v1025, 3
        %v1099 = vpop.permute.xlu0 %1098
        %1100 = vrot.lane.b32.xlu0 %v1026, 3
        %v1101 = vpop.permute.xlu0 %1100
        %1102 = vrot.lane.b32.xlu0 %v1027, 3
        %v1103 = vpop.permute.xlu0 %1102
        %1104 = vrot.lane.b32.xlu0 %v1028, 3
        %v1105 = vpop.permute.xlu0 %1104
        %1106 = vrot.lane.b32.xlu0 %v1029, 3
        %v1107 = vpop.permute.xlu0 %1106
        %1108 = vrot.lane.b32.xlu0 %v1030, 3
        %v1109 = vpop.permute.xlu0 %1108
        %1110 = vrot.lane.b32.xlu0 %v1031, 3
        %v1111 = vpop.permute.xlu0 %1110
        %1112 = vrot.lane.b32.xlu0 %v1032, 3
        %v1113 = vpop.permute.xlu0 %1112
        %1114 = vrot.lane.b32.xlu0 %v1033, 3
        %v1115 = vpop.permute.xlu0 %1114
        %1116 = vrot.lane.b32.xlu0 %v1034, 3
        %v1117 = vpop.permute.xlu0 %1116
        %1118 = vrot.lane.b32.xlu0 %v1035, 3
        %v1119 = vpop.permute.xlu0 %1118
        %1120 = vrot.lane.b32.xlu0 %v1036, 3
        %v1121 = vpop.permute.xlu0 %1120
        %1122 = vrot.lane.b32.xlu0 %v1037, 3
        %v1123 = vpop.permute.xlu0 %1122
        %1124 = vrot.lane.b32.xlu0 %v1038, 3
        %v1125 = vpop.permute.xlu0 %1124
        %1126 = vrot.lane.b32.xlu0 %v1039, 3
        %v1127 = vpop.permute.xlu0 %1126
        %1128 = vrot.lane.b32.xlu0 %v1040, 3
        %v1129 = vpop.permute.xlu0 %1128
        %1130 = vrot.lane.b32.xlu0 %v1041, 3
        %v1131 = vpop.permute.xlu0 %1130
        %1132 = vrot.lane.b32.xlu0 %v1042, 3
        %v1133 = vpop.permute.xlu0 %1132
        %1134 = vrot.lane.b32.xlu0 %v1043, 3
        %v1135 = vpop.permute.xlu0 %1134
        %1136 = vrot.lane.b32.xlu0 %v1044, 3
        %v1137 = vpop.permute.xlu0 %1136
        %1138 = vrot.lane.b32.xlu0 %v1045, 3
        %v1139 = vpop.permute.xlu0 %1138
        %1140 = vrot.lane.b32.xlu0 %v1046, 3
        %v1141 = vpop.permute.xlu0 %1140
        %1142 = vrot.lane.b32.xlu0 %v1047, 3
        %v1143 = vpop.permute.xlu0 %1142
        %v1176 = vmul.f32 %v890, %v1081
        %v1177 = vmul.f32 %v893, %v1083
        %v1178 = vmul.f32 %v898, %v1085
        %v1179 = vmul.f32 %v901, %v1087
        %v1180 = vmul.f32 %v906, %v1089
        %v1181 = vmul.f32 %v909, %v1091
        %v1182 = vmul.f32 %v914, %v1093
        %v1183 = vmul.f32 %v917, %v1095
        %v1184 = vmul.f32 %v922, %v1097
        %v1185 = vmul.f32 %v925, %v1099
        %v1186 = vmul.f32 %v930, %v1101
        %v1187 = vmul.f32 %v933, %v1103
        %v1188 = vmul.f32 %v938, %v1105
        %v1189 = vmul.f32 %v941, %v1107
        %v1190 = vmul.f32 %v946, %v1109
        %v1191 = vmul.f32 %v949, %v1111
        %v1192 = vmul.f32 %v954, %v1113
        %v1193 = vmul.f32 %v957, %v1115
        %v1194 = vmul.f32 %v962, %v1117
        %v1195 = vmul.f32 %v965, %v1119
        %v1196 = vmul.f32 %v970, %v1121
        %v1197 = vmul.f32 %v973, %v1123
        %v1198 = vmul.f32 %v978, %v1125
        %v1199 = vmul.f32 %v981, %v1127
        %v1200 = vmul.f32 %v986, %v1129
        %v1201 = vmul.f32 %v989, %v1131
        %v1202 = vmul.f32 %v994, %v1133
        %v1203 = vmul.f32 %v997, %v1135
        %v1204 = vmul.f32 %v1002, %v1137
        %v1205 = vmul.f32 %v1005, %v1139
        %v1206 = vmul.f32 %v1010, %v1141
        %v1207 = vmul.f32 %v1013, %v1143
        %1208 = vrot.lane.b32.xlu0 %v1016, 125
        %v1209 = vpop.permute.xlu0 %1208
        %1210 = vrot.lane.b32.xlu0 %v1017, 125
        %v1211 = vpop.permute.xlu0 %1210
        %1212 = vrot.lane.b32.xlu0 %v1018, 125
        %v1213 = vpop.permute.xlu0 %1212
        %1214 = vrot.lane.b32.xlu0 %v1019, 125
        %v1215 = vpop.permute.xlu0 %1214
        %1216 = vrot.lane.b32.xlu0 %v1020, 125
        %v1217 = vpop.permute.xlu0 %1216
        %1218 = vrot.lane.b32.xlu0 %v1021, 125
        %v1219 = vpop.permute.xlu0 %1218
        %1220 = vrot.lane.b32.xlu0 %v1022, 125
        %v1221 = vpop.permute.xlu0 %1220
        %1222 = vrot.lane.b32.xlu0 %v1023, 125
        %v1223 = vpop.permute.xlu0 %1222
        %1224 = vrot.lane.b32.xlu0 %v1024, 125
        %v1225 = vpop.permute.xlu0 %1224
        %1226 = vrot.lane.b32.xlu0 %v1025, 125
        %v1227 = vpop.permute.xlu0 %1226
        %1228 = vrot.lane.b32.xlu0 %v1026, 125
        %v1229 = vpop.permute.xlu0 %1228
        %1230 = vrot.lane.b32.xlu0 %v1027, 125
        %v1231 = vpop.permute.xlu0 %1230
        %1232 = vrot.lane.b32.xlu0 %v1028, 125
        %v1233 = vpop.permute.xlu0 %1232
        %1234 = vrot.lane.b32.xlu0 %v1029, 125
        %v1235 = vpop.permute.xlu0 %1234
        %1236 = vrot.lane.b32.xlu0 %v1030, 125
        %v1237 = vpop.permute.xlu0 %1236
        %1238 = vrot.lane.b32.xlu0 %v1031, 125
        %v1239 = vpop.permute.xlu0 %1238
        %1240 = vrot.lane.b32.xlu0 %v1032, 125
        %v1241 = vpop.permute.xlu0 %1240
        %1242 = vrot.lane.b32.xlu0 %v1033, 125
        %v1243 = vpop.permute.xlu0 %1242
        %1244 = vrot.lane.b32.xlu0 %v1034, 125
        %v1245 = vpop.permute.xlu0 %1244
        %1246 = vrot.lane.b32.xlu0 %v1035, 125
        %v1247 = vpop.permute.xlu0 %1246
        %1248 = vrot.lane.b32.xlu0 %v1036, 125
        %v1249 = vpop.permute.xlu0 %1248
        %1250 = vrot.lane.b32.xlu0 %v1037, 125
        %v1251 = vpop.permute.xlu0 %1250
        %1252 = vrot.lane.b32.xlu0 %v1038, 125
        %v1253 = vpop.permute.xlu0 %1252
        %1254 = vrot.lane.b32.xlu0 %v1039, 125
        %v1255 = vpop.permute.xlu0 %1254
        %1256 = vrot.lane.b32.xlu0 %v1040, 125
        %v1257 = vpop.permute.xlu0 %1256
        %1258 = vrot.lane.b32.xlu0 %v1041, 125
        %v1259 = vpop.permute.xlu0 %1258
        %1260 = vrot.lane.b32.xlu0 %v1042, 125
        %v1261 = vpop.permute.xlu0 %1260
        %1262 = vrot.lane.b32.xlu0 %v1043, 125
        %v1263 = vpop.permute.xlu0 %1262
        %1264 = vrot.lane.b32.xlu0 %v1044, 125
        %v1265 = vpop.permute.xlu0 %1264
        %1266 = vrot.lane.b32.xlu0 %v1045, 125
        %v1267 = vpop.permute.xlu0 %1266
        %1268 = vrot.lane.b32.xlu0 %v1046, 125
        %v1269 = vpop.permute.xlu0 %1268
        %1270 = vrot.lane.b32.xlu0 %v1047, 125
        %v1271 = vpop.permute.xlu0 %1270
        %v1304 = vadd.f32 %v1176, %v1209
        %v1305 = vadd.f32 %v1177, %v1211
        %v1306 = vadd.f32 %v1178, %v1213
        %v1307 = vadd.f32 %v1179, %v1215
        %v1308 = vadd.f32 %v1180, %v1217
        %v1309 = vadd.f32 %v1181, %v1219
        %v1310 = vadd.f32 %v1182, %v1221
        %v1311 = vadd.f32 %v1183, %v1223
        %v1312 = vadd.f32 %v1184, %v1225
        %v1313 = vadd.f32 %v1185, %v1227
        %v1314 = vadd.f32 %v1186, %v1229
        %v1315 = vadd.f32 %v1187, %v1231
        %v1316 = vadd.f32 %v1188, %v1233
        %v1317 = vadd.f32 %v1189, %v1235
        %v1318 = vadd.f32 %v1190, %v1237
        %v1319 = vadd.f32 %v1191, %v1239
        %v1320 = vadd.f32 %v1192, %v1241
        %v1321 = vadd.f32 %v1193, %v1243
        %v1322 = vadd.f32 %v1194, %v1245
        %v1323 = vadd.f32 %v1195, %v1247
        %v1324 = vadd.f32 %v1196, %v1249
        %v1325 = vadd.f32 %v1197, %v1251
        %v1326 = vadd.f32 %v1198, %v1253
        %v1327 = vadd.f32 %v1199, %v1255
        %v1328 = vadd.f32 %v1200, %v1257
        %v1329 = vadd.f32 %v1201, %v1259
        %v1330 = vadd.f32 %v1202, %v1261
        %v1331 = vadd.f32 %v1203, %v1263
        %v1332 = vadd.f32 %v1204, %v1265
        %v1333 = vadd.f32 %v1205, %v1267
        %v1334 = vadd.f32 %v1206, %v1269
        %v1335 = vadd.f32 %v1207, %v1271
        %v1336 = vmin.f32 %v890, 4.1351666
        %v1337 = vmin.f32 %v893, 4.1351666
        %v1338 = vmin.f32 %v898, 4.1351666
        %v1339 = vmin.f32 %v901, 4.1351666
        %v1340 = vmin.f32 %v906, 4.1351666
        %v1341 = vmin.f32 %v909, 4.1351666
        %v1342 = vmin.f32 %v914, 4.1351666
        %v1343 = vmin.f32 %v917, 4.1351666
        %v1344 = vmin.f32 %v922, 4.1351666
        %v1345 = vmin.f32 %v925, 4.1351666
        %v1346 = vmin.f32 %v930, 4.1351666
        %v1347 = vmin.f32 %v933, 4.1351666
        %v1348 = vmin.f32 %v938, 4.1351666
        %v1349 = vmin.f32 %v941, 4.1351666
        %v1350 = vmin.f32 %v946, 4.1351666
        %v1351 = vmin.f32 %v949, 4.1351666
        %v1352 = vmin.f32 %v954, 4.1351666
        %v1353 = vmin.f32 %v957, 4.1351666
        %v1354 = vmin.f32 %v962, 4.1351666
        %v1355 = vmin.f32 %v965, 4.1351666
        %v1356 = vmin.f32 %v970, 4.1351666
        %v1357 = vmin.f32 %v973, 4.1351666
        %v1358 = vmin.f32 %v978, 4.1351666
        %v1359 = vmin.f32 %v981, 4.1351666
        %v1360 = vmin.f32 %v986, 4.1351666
        %v1361 = vmin.f32 %v989, 4.1351666
        %v1362 = vmin.f32 %v994, 4.1351666
        %v1363 = vmin.f32 %v997, 4.1351666
        %v1364 = vmin.f32 %v1002, 4.1351666
        %v1365 = vmin.f32 %v1005, 4.1351666
        %v1366 = vmin.f32 %v1010, 4.1351666
        %v1367 = vmin.f32 %v1013, 4.1351666
        %v1368 = vmul.f32 %v1336, 1.442695
        %v1369 = vpow.pop %v1368
        %v1370 = vmul.f32 %v1337, 1.442695
        %v1371 = vpow.pop %v1370
        %v1372 = vmul.f32 %v1338, 1.442695
        %v1373 = vpow.pop %v1372
        %v1374 = vmul.f32 %v1339, 1.442695
        %v1375 = vpow.pop %v1374
        %v1376 = vmul.f32 %v1340, 1.442695
        %v1377 = vpow.pop %v1376
        %v1378 = vmul.f32 %v1341, 1.442695
        %v1379 = vpow.pop %v1378
        %v1380 = vmul.f32 %v1342, 1.442695
        %v1381 = vpow.pop %v1380
        %v1382 = vmul.f32 %v1343, 1.442695
        %v1383 = vpow.pop %v1382
        %v1384 = vmul.f32 %v1344, 1.442695
        %v1385 = vpow.pop %v1384
        %v1386 = vmul.f32 %v1345, 1.442695
        %v1387 = vpow.pop %v1386
        %v1388 = vmul.f32 %v1346, 1.442695
        %v1389 = vpow.pop %v1388
        %v1390 = vmul.f32 %v1347, 1.442695
        %v1391 = vpow.pop %v1390
        %v1392 = vmul.f32 %v1348, 1.442695
        %v1393 = vpow.pop %v1392
        %v1394 = vmul.f32 %v1349, 1.442695
        %v1395 = vpow.pop %v1394
        %v1396 = vmul.f32 %v1350, 1.442695
        %v1397 = vpow.pop %v1396
        %v1398 = vmul.f32 %v1351, 1.442695
        %v1399 = vpow.pop %v1398
        %v1400 = vmul.f32 %v1352, 1.442695
        %v1401 = vpow.pop %v1400
        %v1402 = vmul.f32 %v1353, 1.442695
        %v1403 = vpow.pop %v1402
        %v1404 = vmul.f32 %v1354, 1.442695
        %v1405 = vpow.pop %v1404
        %v1406 = vmul.f32 %v1355, 1.442695
        %v1407 = vpow.pop %v1406
        %v1408 = vmul.f32 %v1356, 1.442695
        %v1409 = vpow.pop %v1408
        %v1410 = vmul.f32 %v1357, 1.442695
        %v1411 = vpow.pop %v1410
        %v1412 = vmul.f32 %v1358, 1.442695
        %v1413 = vpow.pop %v1412
        %v1414 = vmul.f32 %v1359, 1.442695
        %v1415 = vpow.pop %v1414
        %v1416 = vmul.f32 %v1360, 1.442695
        %v1417 = vpow.pop %v1416
        %v1418 = vmul.f32 %v1361, 1.442695
        %v1419 = vpow.pop %v1418
        %v1420 = vmul.f32 %v1362, 1.442695
        %v1421 = vpow.pop %v1420
        %v1422 = vmul.f32 %v1363, 1.442695
        %v1423 = vpow.pop %v1422
        %v1424 = vmul.f32 %v1364, 1.442695
        %v1425 = vpow.pop %v1424
        %v1426 = vmul.f32 %v1365, 1.442695
        %v1427 = vpow.pop %v1426
        %v1428 = vmul.f32 %v1366, 1.442695
        %v1429 = vpow.pop %v1428
        %v1430 = vmul.f32 %v1367, 1.442695
        %v1431 = vpow.pop %v1430
        %1432 = vrot.lane.b32.xlu0 %v1016, 9
        %v1433 = vpop.permute.xlu0 %1432
        %1434 = vrot.lane.b32.xlu0 %v1017, 9
        %v1435 = vpop.permute.xlu0 %1434
        %1436 = vrot.lane.b32.xlu0 %v1018, 9
        %v1437 = vpop.permute.xlu0 %1436
        %1438 = vrot.lane.b32.xlu0 %v1019, 9
        %v1439 = vpop.permute.xlu0 %1438
        %1440 = vrot.lane.b32.xlu0 %v1020, 9
        %v1441 = vpop.permute.xlu0 %1440
        %1442 = vrot.lane.b32.xlu0 %v1021, 9
        %v1443 = vpop.permute.xlu0 %1442
        %1444 = vrot.lane.b32.xlu0 %v1022, 9
        %v1445 = vpop.permute.xlu0 %1444
        %1446 = vrot.lane.b32.xlu0 %v1023, 9
        %v1447 = vpop.permute.xlu0 %1446
        %1448 = vrot.lane.b32.xlu0 %v1024, 9
        %v1449 = vpop.permute.xlu0 %1448
        %1450 = vrot.lane.b32.xlu0 %v1025, 9
        %v1451 = vpop.permute.xlu0 %1450
        %1452 = vrot.lane.b32.xlu0 %v1026, 9
        %v1453 = vpop.permute.xlu0 %1452
        %1454 = vrot.lane.b32.xlu0 %v1027, 9
        %v1455 = vpop.permute.xlu0 %1454
        %1456 = vrot.lane.b32.xlu0 %v1028, 9
        %v1457 = vpop.permute.xlu0 %1456
        %1458 = vrot.lane.b32.xlu0 %v1029, 9
        %v1459 = vpop.permute.xlu0 %1458
        %1460 = vrot.lane.b32.xlu0 %v1030, 9
        %v1461 = vpop.permute.xlu0 %1460
        %1462 = vrot.lane.b32.xlu0 %v1031, 9
        %v1463 = vpop.permute.xlu0 %1462
        %1464 = vrot.lane.b32.xlu0 %v1032, 9
        %v1465 = vpop.permute.xlu0 %1464
        %1466 = vrot.lane.b32.xlu0 %v1033, 9
        %v1467 = vpop.permute.xlu0 %1466
        %1468 = vrot.lane.b32.xlu0 %v1034, 9
        %v1469 = vpop.permute.xlu0 %1468
        %1470 = vrot.lane.b32.xlu0 %v1035, 9
        %v1471 = vpop.permute.xlu0 %1470
        %1472 = vrot.lane.b32.xlu0 %v1036, 9
        %v1473 = vpop.permute.xlu0 %1472
        %1474 = vrot.lane.b32.xlu0 %v1037, 9
        %v1475 = vpop.permute.xlu0 %1474
        %1476 = vrot.lane.b32.xlu0 %v1038, 9
        %v1477 = vpop.permute.xlu0 %1476
        %1478 = vrot.lane.b32.xlu0 %v1039, 9
        %v1479 = vpop.permute.xlu0 %1478
        %1480 = vrot.lane.b32.xlu0 %v1040, 9
        %v1481 = vpop.permute.xlu0 %1480
        %1482 = vrot.lane.b32.xlu0 %v1041, 9
        %v1483 = vpop.permute.xlu0 %1482
        %1484 = vrot.lane.b32.xlu0 %v1042, 9
        %v1485 = vpop.permute.xlu0 %1484
        %1486 = vrot.lane.b32.xlu0 %v1043, 9
        %v1487 = vpop.permute.xlu0 %1486
        %1488 = vrot.lane.b32.xlu0 %v1044, 9
        %v1489 = vpop.permute.xlu0 %1488
        %1490 = vrot.lane.b32.xlu0 %v1045, 9
        %v1491 = vpop.permute.xlu0 %1490
        %1492 = vrot.lane.b32.xlu0 %v1046, 9
        %v1493 = vpop.permute.xlu0 %1492
        %1494 = vrot.lane.b32.xlu0 %v1047, 9
        %v1495 = vpop.permute.xlu0 %1494
        %v1528 = vmul.f32 %v1369, %v1433
        %v1529 = vmul.f32 %v1371, %v1435
        %v1530 = vmul.f32 %v1373, %v1437
        %v1531 = vmul.f32 %v1375, %v1439
        %v1532 = vmul.f32 %v1377, %v1441
        %v1533 = vmul.f32 %v1379, %v1443
        %v1534 = vmul.f32 %v1381, %v1445
        %v1535 = vmul.f32 %v1383, %v1447
        %v1536 = vmul.f32 %v1385, %v1449
        %v1537 = vmul.f32 %v1387, %v1451
        %v1538 = vmul.f32 %v1389, %v1453
        %v1539 = vmul.f32 %v1391, %v1455
        %v1540 = vmul.f32 %v1393, %v1457
        %v1541 = vmul.f32 %v1395, %v1459
        %v1542 = vmul.f32 %v1397, %v1461
        %v1543 = vmul.f32 %v1399, %v1463
        %v1544 = vmul.f32 %v1401, %v1465
        %v1545 = vmul.f32 %v1403, %v1467
        %v1546 = vmul.f32 %v1405, %v1469
        %v1547 = vmul.f32 %v1407, %v1471
        %v1548 = vmul.f32 %v1409, %v1473
        %v1549 = vmul.f32 %v1411, %v1475
        %v1550 = vmul.f32 %v1413, %v1477
        %v1551 = vmul.f32 %v1415, %v1479
        %v1552 = vmul.f32 %v1417, %v1481
        %v1553 = vmul.f32 %v1419, %v1483
        %v1554 = vmul.f32 %v1421, %v1485
        %v1555 = vmul.f32 %v1423, %v1487
        %v1556 = vmul.f32 %v1425, %v1489
        %v1557 = vmul.f32 %v1427, %v1491
        %v1558 = vmul.f32 %v1429, %v1493
        %v1559 = vmul.f32 %v1431, %v1495
        %v1560 = vmul.f32 %v1528, 0.5
        %v1561 = vmul.f32 %v1529, 0.5
        %v1562 = vmul.f32 %v1530, 0.5
        %v1563 = vmul.f32 %v1531, 0.5
        %v1564 = vmul.f32 %v1532, 0.5
        %v1565 = vmul.f32 %v1533, 0.5
        %v1566 = vmul.f32 %v1534, 0.5
        %v1567 = vmul.f32 %v1535, 0.5
        %v1568 = vmul.f32 %v1536, 0.5
        %v1569 = vmul.f32 %v1537, 0.5
        %v1570 = vmul.f32 %v1538, 0.5
        %v1571 = vmul.f32 %v1539, 0.5
        %v1572 = vmul.f32 %v1540, 0.5
        %v1573 = vmul.f32 %v1541, 0.5
        %v1574 = vmul.f32 %v1542, 0.5
        %v1575 = vmul.f32 %v1543, 0.5
        %v1576 = vmul.f32 %v1544, 0.5
        %v1577 = vmul.f32 %v1545, 0.5
        %v1578 = vmul.f32 %v1546, 0.5
        %v1579 = vmul.f32 %v1547, 0.5
        %v1580 = vmul.f32 %v1548, 0.5
        %v1581 = vmul.f32 %v1549, 0.5
        %v1582 = vmul.f32 %v1550, 0.5
        %v1583 = vmul.f32 %v1551, 0.5
        %v1584 = vmul.f32 %v1552, 0.5
        %v1585 = vmul.f32 %v1553, 0.5
        %v1586 = vmul.f32 %v1554, 0.5
        %v1587 = vmul.f32 %v1555, 0.5
        %v1588 = vmul.f32 %v1556, 0.5
        %v1589 = vmul.f32 %v1557, 0.5
        %v1590 = vmul.f32 %v1558, 0.5
        %v1591 = vmul.f32 %v1559, 0.5
        %1624 = vrot.lane.b32.xlu0 %v1560, 122
        %v1625 = vpop.permute.xlu0 %1624
        %1626 = vrot.lane.b32.xlu0 %v1561, 122
        %v1627 = vpop.permute.xlu0 %1626
        %1628 = vrot.lane.b32.xlu0 %v1562, 122
        %v1629 = vpop.permute.xlu0 %1628
        %1630 = vrot.lane.b32.xlu0 %v1563, 122
        %v1631 = vpop.permute.xlu0 %1630
        %1632 = vrot.lane.b32.xlu0 %v1564, 122
        %v1633 = vpop.permute.xlu0 %1632
        %1634 = vrot.lane.b32.xlu0 %v1565, 122
        %v1635 = vpop.permute.xlu0 %1634
        %1636 = vrot.lane.b32.xlu0 %v1566, 122
        %v1637 = vpop.permute.xlu0 %1636
        %1638 = vrot.lane.b32.xlu0 %v1567, 122
        %v1639 = vpop.permute.xlu0 %1638
        %1640 = vrot.lane.b32.xlu0 %v1568, 122
        %v1641 = vpop.permute.xlu0 %1640
        %1642 = vrot.lane.b32.xlu0 %v1569, 122
        %v1643 = vpop.permute.xlu0 %1642
        %1644 = vrot.lane.b32.xlu0 %v1570, 122
        %v1645 = vpop.permute.xlu0 %1644
        %1646 = vrot.lane.b32.xlu0 %v1571, 122
        %v1647 = vpop.permute.xlu0 %1646
        %1648 = vrot.lane.b32.xlu0 %v1572, 122
        %v1649 = vpop.permute.xlu0 %1648
        %1650 = vrot.lane.b32.xlu0 %v1573, 122
        %v1651 = vpop.permute.xlu0 %1650
        %1652 = vrot.lane.b32.xlu0 %v1574, 122
        %v1653 = vpop.permute.xlu0 %1652
        %1654 = vrot.lane.b32.xlu0 %v1575, 122
        %v1655 = vpop.permute.xlu0 %1654
        %1656 = vrot.lane.b32.xlu0 %v1576, 122
        %v1657 = vpop.permute.xlu0 %1656
        %1658 = vrot.lane.b32.xlu0 %v1577, 122
        %v1659 = vpop.permute.xlu0 %1658
        %1660 = vrot.lane.b32.xlu0 %v1578, 122
        %v1661 = vpop.permute.xlu0 %1660
        %1662 = vrot.lane.b32.xlu0 %v1579, 122
        %v1663 = vpop.permute.xlu0 %1662
        %1664 = vrot.lane.b32.xlu0 %v1580, 122
        %v1665 = vpop.permute.xlu0 %1664
        %1666 = vrot.lane.b32.xlu0 %v1581, 122
        %v1667 = vpop.permute.xlu0 %1666
        %1668 = vrot.lane.b32.xlu0 %v1582, 122
        %v1669 = vpop.permute.xlu0 %1668
        %1670 = vrot.lane.b32.xlu0 %v1583, 122
        %v1671 = vpop.permute.xlu0 %1670
        %1672 = vrot.lane.b32.xlu0 %v1584, 122
        %v1673 = vpop.permute.xlu0 %1672
        %1674 = vrot.lane.b32.xlu0 %v1585, 122
        %v1675 = vpop.permute.xlu0 %1674
        %1676 = vrot.lane.b32.xlu0 %v1586, 122
        %v1677 = vpop.permute.xlu0 %1676
        %1678 = vrot.lane.b32.xlu0 %v1587, 122
        %v1679 = vpop.permute.xlu0 %1678
        %1680 = vrot.lane.b32.xlu0 %v1588, 122
        %v1681 = vpop.permute.xlu0 %1680
        %1682 = vrot.lane.b32.xlu0 %v1589, 122
        %v1683 = vpop.permute.xlu0 %1682
        %1684 = vrot.lane.b32.xlu0 %v1590, 122
        %v1685 = vpop.permute.xlu0 %1684
        %1686 = vrot.lane.b32.xlu0 %v1591, 122
        %v1687 = vpop.permute.xlu0 %1686
        %v1720 = vsub.f32 %v1304, %v1625
        %v1721 = vsub.f32 %v1305, %v1627
        %v1722 = vsub.f32 %v1306, %v1629
        %v1723 = vsub.f32 %v1307, %v1631
        %v1724 = vsub.f32 %v1308, %v1633
        %v1725 = vsub.f32 %v1309, %v1635
        %v1726 = vsub.f32 %v1310, %v1637
        %v1727 = vsub.f32 %v1311, %v1639
        %v1728 = vsub.f32 %v1312, %v1641
        %v1729 = vsub.f32 %v1313, %v1643
        %v1730 = vsub.f32 %v1314, %v1645
        %v1731 = vsub.f32 %v1315, %v1647
        %v1732 = vsub.f32 %v1316, %v1649
        %v1733 = vsub.f32 %v1317, %v1651
        %v1734 = vsub.f32 %v1318, %v1653
        %v1735 = vsub.f32 %v1319, %v1655
        %v1736 = vsub.f32 %v1320, %v1657
        %v1737 = vsub.f32 %v1321, %v1659
        %v1738 = vsub.f32 %v1322, %v1661
        %v1739 = vsub.f32 %v1323, %v1663
        %v1740 = vsub.f32 %v1324, %v1665
        %v1741 = vsub.f32 %v1325, %v1667
        %v1742 = vsub.f32 %v1326, %v1669
        %v1743 = vsub.f32 %v1327, %v1671
        %v1744 = vsub.f32 %v1328, %v1673
        %v1745 = vsub.f32 %v1329, %v1675
        %v1746 = vsub.f32 %v1330, %v1677
        %v1747 = vsub.f32 %v1331, %v1679
        %v1748 = vsub.f32 %v1332, %v1681
        %v1749 = vsub.f32 %v1333, %v1683
        %v1750 = vsub.f32 %v1334, %v1685
        %v1751 = vsub.f32 %v1335, %v1687
        %v1752 = vmax.f32 %v1720, 0.0
        %v1753 = vmax.f32 %v1721, 0.0
        %v1754 = vmax.f32 %v1722, 0.0
        %v1755 = vmax.f32 %v1723, 0.0
        %v1756 = vmax.f32 %v1724, 0.0
        %v1757 = vmax.f32 %v1725, 0.0
        %v1758 = vmax.f32 %v1726, 0.0
        %v1759 = vmax.f32 %v1727, 0.0
        %v1760 = vmax.f32 %v1728, 0.0
        %v1761 = vmax.f32 %v1729, 0.0
        %v1762 = vmax.f32 %v1730, 0.0
        %v1763 = vmax.f32 %v1731, 0.0
        %v1764 = vmax.f32 %v1732, 0.0
        %v1765 = vmax.f32 %v1733, 0.0
        %v1766 = vmax.f32 %v1734, 0.0
        %v1767 = vmax.f32 %v1735, 0.0
        %v1768 = vmax.f32 %v1736, 0.0
        %v1769 = vmax.f32 %v1737, 0.0
        %v1770 = vmax.f32 %v1738, 0.0
        %v1771 = vmax.f32 %v1739, 0.0
        %v1772 = vmax.f32 %v1740, 0.0
        %v1773 = vmax.f32 %v1741, 0.0
        %v1774 = vmax.f32 %v1742, 0.0
        %v1775 = vmax.f32 %v1743, 0.0
        %v1776 = vmax.f32 %v1744, 0.0
        %v1777 = vmax.f32 %v1745, 0.0
        %v1778 = vmax.f32 %v1746, 0.0
        %v1779 = vmax.f32 %v1747, 0.0
        %v1780 = vmax.f32 %v1748, 0.0
        %v1781 = vmax.f32 %v1749, 0.0
        %v1782 = vmax.f32 %v1750, 0.0
        %v1783 = vmax.f32 %v1751, 0.0
        %1784 = vrot.lane.b32.xlu0 %v1016, 119
        %v1785 = vpop.permute.xlu0 %1784
        %1786 = vrot.lane.b32.xlu0 %v1017, 119
        %v1787 = vpop.permute.xlu0 %1786
        %1788 = vrot.lane.b32.xlu0 %v1018, 119
        %v1789 = vpop.permute.xlu0 %1788
        %1790 = vrot.lane.b32.xlu0 %v1019, 119
        %v1791 = vpop.permute.xlu0 %1790
        %1792 = vrot.lane.b32.xlu0 %v1020, 119
        %v1793 = vpop.permute.xlu0 %1792
        %1794 = vrot.lane.b32.xlu0 %v1021, 119
        %v1795 = vpop.permute.xlu0 %1794
        %1796 = vrot.lane.b32.xlu0 %v1022, 119
        %v1797 = vpop.permute.xlu0 %1796
        %1798 = vrot.lane.b32.xlu0 %v1023, 119
        %v1799 = vpop.permute.xlu0 %1798
        %1800 = vrot.lane.b32.xlu0 %v1024, 119
        %v1801 = vpop.permute.xlu0 %1800
        %1802 = vrot.lane.b32.xlu0 %v1025, 119
        %v1803 = vpop.permute.xlu0 %1802
        %1804 = vrot.lane.b32.xlu0 %v1026, 119
        %v1805 = vpop.permute.xlu0 %1804
        %1806 = vrot.lane.b32.xlu0 %v1027, 119
        %v1807 = vpop.permute.xlu0 %1806
        %1808 = vrot.lane.b32.xlu0 %v1028, 119
        %v1809 = vpop.permute.xlu0 %1808
        %1810 = vrot.lane.b32.xlu0 %v1029, 119
        %v1811 = vpop.permute.xlu0 %1810
        %1812 = vrot.lane.b32.xlu0 %v1030, 119
        %v1813 = vpop.permute.xlu0 %1812
        %1814 = vrot.lane.b32.xlu0 %v1031, 119
        %v1815 = vpop.permute.xlu0 %1814
        %1816 = vrot.lane.b32.xlu0 %v1032, 119
        %v1817 = vpop.permute.xlu0 %1816
        %1818 = vrot.lane.b32.xlu0 %v1033, 119
        %v1819 = vpop.permute.xlu0 %1818
        %1820 = vrot.lane.b32.xlu0 %v1034, 119
        %v1821 = vpop.permute.xlu0 %1820
        %1822 = vrot.lane.b32.xlu0 %v1035, 119
        %v1823 = vpop.permute.xlu0 %1822
        %1824 = vrot.lane.b32.xlu0 %v1036, 119
        %v1825 = vpop.permute.xlu0 %1824
        %1826 = vrot.lane.b32.xlu0 %v1037, 119
        %v1827 = vpop.permute.xlu0 %1826
        %1828 = vrot.lane.b32.xlu0 %v1038, 119
        %v1829 = vpop.permute.xlu0 %1828
        %1830 = vrot.lane.b32.xlu0 %v1039, 119
        %v1831 = vpop.permute.xlu0 %1830
        %1832 = vrot.lane.b32.xlu0 %v1040, 119
        %v1833 = vpop.permute.xlu0 %1832
        %1834 = vrot.lane.b32.xlu0 %v1041, 119
        %v1835 = vpop.permute.xlu0 %1834
        %1836 = vrot.lane.b32.xlu0 %v1042, 119
        %v1837 = vpop.permute.xlu0 %1836
        %1838 = vrot.lane.b32.xlu0 %v1043, 119
        %v1839 = vpop.permute.xlu0 %1838
        %1840 = vrot.lane.b32.xlu0 %v1044, 119
        %v1841 = vpop.permute.xlu0 %1840
        %1842 = vrot.lane.b32.xlu0 %v1045, 119
        %v1843 = vpop.permute.xlu0 %1842
        %1844 = vrot.lane.b32.xlu0 %v1046, 119
        %v1845 = vpop.permute.xlu0 %1844
        %1846 = vrot.lane.b32.xlu0 %v1047, 119
        %v1847 = vpop.permute.xlu0 %1846
        %v1880 = vmin.f32 %v1752, %v1785
        %v1881 = vmin.f32 %v1753, %v1787
        %v1882 = vmin.f32 %v1754, %v1789
        %v1883 = vmin.f32 %v1755, %v1791
        %v1884 = vmin.f32 %v1756, %v1793
        %v1885 = vmin.f32 %v1757, %v1795
        %v1886 = vmin.f32 %v1758, %v1797
        %v1887 = vmin.f32 %v1759, %v1799
        %v1888 = vmin.f32 %v1760, %v1801
        %v1889 = vmin.f32 %v1761, %v1803
        %v1890 = vmin.f32 %v1762, %v1805
        %v1891 = vmin.f32 %v1763, %v1807
        %v1892 = vmin.f32 %v1764, %v1809
        %v1893 = vmin.f32 %v1765, %v1811
        %v1894 = vmin.f32 %v1766, %v1813
        %v1895 = vmin.f32 %v1767, %v1815
        %v1896 = vmin.f32 %v1768, %v1817
        %v1897 = vmin.f32 %v1769, %v1819
        %v1898 = vmin.f32 %v1770, %v1821
        %v1899 = vmin.f32 %v1771, %v1823
        %v1900 = vmin.f32 %v1772, %v1825
        %v1901 = vmin.f32 %v1773, %v1827
        %v1902 = vmin.f32 %v1774, %v1829
        %v1903 = vmin.f32 %v1775, %v1831
        %v1904 = vmin.f32 %v1776, %v1833
        %v1905 = vmin.f32 %v1777, %v1835
        %v1906 = vmin.f32 %v1778, %v1837
        %v1907 = vmin.f32 %v1779, %v1839
        %v1908 = vmin.f32 %v1780, %v1841
        %v1909 = vmin.f32 %v1781, %v1843
        %v1910 = vmin.f32 %v1782, %v1845
        %v1911 = vmin.f32 %v1783, %v1847
        %v1912 = vadd.f32 %v1304, %v1625
        %v1913 = vadd.f32 %v1305, %v1627
        %v1914 = vadd.f32 %v1306, %v1629
        %v1915 = vadd.f32 %v1307, %v1631
        %v1916 = vadd.f32 %v1308, %v1633
        %v1917 = vadd.f32 %v1309, %v1635
        %v1918 = vadd.f32 %v1310, %v1637
        %v1919 = vadd.f32 %v1311, %v1639
        %v1920 = vadd.f32 %v1312, %v1641
        %v1921 = vadd.f32 %v1313, %v1643
        %v1922 = vadd.f32 %v1314, %v1645
        %v1923 = vadd.f32 %v1315, %v1647
        %v1924 = vadd.f32 %v1316, %v1649
        %v1925 = vadd.f32 %v1317, %v1651
        %v1926 = vadd.f32 %v1318, %v1653
        %v1927 = vadd.f32 %v1319, %v1655
        %v1928 = vadd.f32 %v1320, %v1657
        %v1929 = vadd.f32 %v1321, %v1659
        %v1930 = vadd.f32 %v1322, %v1661
        %v1931 = vadd.f32 %v1323, %v1663
        %v1932 = vadd.f32 %v1324, %v1665
        %v1933 = vadd.f32 %v1325, %v1667
        %v1934 = vadd.f32 %v1326, %v1669
        %v1935 = vadd.f32 %v1327, %v1671
        %v1936 = vadd.f32 %v1328, %v1673
        %v1937 = vadd.f32 %v1329, %v1675
        %v1938 = vadd.f32 %v1330, %v1677
        %v1939 = vadd.f32 %v1331, %v1679
        %v1940 = vadd.f32 %v1332, %v1681
        %v1941 = vadd.f32 %v1333, %v1683
        %v1942 = vadd.f32 %v1334, %v1685
        %v1943 = vadd.f32 %v1335, %v1687
        %v1944 = vmax.f32 %v1912, 0.0
        %v1945 = vmax.f32 %v1913, 0.0
        %v1946 = vmax.f32 %v1914, 0.0
        %v1947 = vmax.f32 %v1915, 0.0
        %v1948 = vmax.f32 %v1916, 0.0
        %v1949 = vmax.f32 %v1917, 0.0
        %v1950 = vmax.f32 %v1918, 0.0
        %v1951 = vmax.f32 %v1919, 0.0
        %v1952 = vmax.f32 %v1920, 0.0
        %v1953 = vmax.f32 %v1921, 0.0
        %v1954 = vmax.f32 %v1922, 0.0
        %v1955 = vmax.f32 %v1923, 0.0
        %v1956 = vmax.f32 %v1924, 0.0
        %v1957 = vmax.f32 %v1925, 0.0
        %v1958 = vmax.f32 %v1926, 0.0
        %v1959 = vmax.f32 %v1927, 0.0
        %v1960 = vmax.f32 %v1928, 0.0
        %v1961 = vmax.f32 %v1929, 0.0
        %v1962 = vmax.f32 %v1930, 0.0
        %v1963 = vmax.f32 %v1931, 0.0
        %v1964 = vmax.f32 %v1932, 0.0
        %v1965 = vmax.f32 %v1933, 0.0
        %v1966 = vmax.f32 %v1934, 0.0
        %v1967 = vmax.f32 %v1935, 0.0
        %v1968 = vmax.f32 %v1936, 0.0
        %v1969 = vmax.f32 %v1937, 0.0
        %v1970 = vmax.f32 %v1938, 0.0
        %v1971 = vmax.f32 %v1939, 0.0
        %v1972 = vmax.f32 %v1940, 0.0
        %v1973 = vmax.f32 %v1941, 0.0
        %v1974 = vmax.f32 %v1942, 0.0
        %v1975 = vmax.f32 %v1943, 0.0
        %v1976 = vmin.f32 %v1944, %v1785
        %v1977 = vmin.f32 %v1945, %v1787
        %v1978 = vmin.f32 %v1946, %v1789
        %v1979 = vmin.f32 %v1947, %v1791
        %v1980 = vmin.f32 %v1948, %v1793
        %v1981 = vmin.f32 %v1949, %v1795
        %v1982 = vmin.f32 %v1950, %v1797
        %v1983 = vmin.f32 %v1951, %v1799
        %v1984 = vmin.f32 %v1952, %v1801
        %v1985 = vmin.f32 %v1953, %v1803
        %v1986 = vmin.f32 %v1954, %v1805
        %v1987 = vmin.f32 %v1955, %v1807
        %v1988 = vmin.f32 %v1956, %v1809
        %v1989 = vmin.f32 %v1957, %v1811
        %v1990 = vmin.f32 %v1958, %v1813
        %v1991 = vmin.f32 %v1959, %v1815
        %v1992 = vmin.f32 %v1960, %v1817
        %v1993 = vmin.f32 %v1961, %v1819
        %v1994 = vmin.f32 %v1962, %v1821
        %v1995 = vmin.f32 %v1963, %v1823
        %v1996 = vmin.f32 %v1964, %v1825
        %v1997 = vmin.f32 %v1965, %v1827
        %v1998 = vmin.f32 %v1966, %v1829
        %v1999 = vmin.f32 %v1967, %v1831
        %v2000 = vmin.f32 %v1968, %v1833
        %v2001 = vmin.f32 %v1969, %v1835
        %v2002 = vmin.f32 %v1970, %v1837
        %v2003 = vmin.f32 %v1971, %v1839
        %v2004 = vmin.f32 %v1972, %v1841
        %v2005 = vmin.f32 %v1973, %v1843
        %v2006 = vmin.f32 %v1974, %v1845
        %v2007 = vmin.f32 %v1975, %v1847
        %v2008 = vsub.f32 %v1976, %v1880
        %v2009 = vsub.f32 %v1977, %v1881
        %v2010 = vsub.f32 %v1978, %v1882
        %v2011 = vsub.f32 %v1979, %v1883
        %v2012 = vsub.f32 %v1980, %v1884
        %v2013 = vsub.f32 %v1981, %v1885
        %v2014 = vsub.f32 %v1982, %v1886
        %v2015 = vsub.f32 %v1983, %v1887
        %v2016 = vsub.f32 %v1984, %v1888
        %v2017 = vsub.f32 %v1985, %v1889
        %v2018 = vsub.f32 %v1986, %v1890
        %v2019 = vsub.f32 %v1987, %v1891
        %v2020 = vsub.f32 %v1988, %v1892
        %v2021 = vsub.f32 %v1989, %v1893
        %v2022 = vsub.f32 %v1990, %v1894
        %v2023 = vsub.f32 %v1991, %v1895
        %v2024 = vsub.f32 %v1992, %v1896
        %v2025 = vsub.f32 %v1993, %v1897
        %v2026 = vsub.f32 %v1994, %v1898
        %v2027 = vsub.f32 %v1995, %v1899
        %v2028 = vsub.f32 %v1996, %v1900
        %v2029 = vsub.f32 %v1997, %v1901
        %v2030 = vsub.f32 %v1998, %v1902
        %v2031 = vsub.f32 %v1999, %v1903
        %v2032 = vsub.f32 %v2000, %v1904
        %v2033 = vsub.f32 %v2001, %v1905
        %v2034 = vsub.f32 %v2002, %v1906
        %v2035 = vsub.f32 %v2003, %v1907
        %v2036 = vsub.f32 %v2004, %v1908
        %v2037 = vsub.f32 %v2005, %v1909
        %v2038 = vsub.f32 %v2006, %v1910
        %v2039 = vsub.f32 %v2007, %v1911
        %vm2040 = vcmp.ge.f32.partialorder %v2008, 0.001
        %vm2041 = vcmp.ge.f32.partialorder %v2009, 0.001
        %vm2042 = vcmp.ge.f32.partialorder %v2010, 0.001
        %vm2043 = vcmp.ge.f32.partialorder %v2011, 0.001
        %vm2044 = vcmp.ge.f32.partialorder %v2012, 0.001
        %vm2045 = vcmp.ge.f32.partialorder %v2013, 0.001
        %vm2046 = vcmp.ge.f32.partialorder %v2014, 0.001
        %vm2047 = vcmp.ge.f32.partialorder %v2015, 0.001
        %vm2048 = vcmp.ge.f32.partialorder %v2016, 0.001
        %vm2049 = vcmp.ge.f32.partialorder %v2017, 0.001
        %vm2050 = vcmp.ge.f32.partialorder %v2018, 0.001
        %vm2051 = vcmp.ge.f32.partialorder %v2019, 0.001
        %vm2052 = vcmp.ge.f32.partialorder %v2020, 0.001
        %vm2053 = vcmp.ge.f32.partialorder %v2021, 0.001
        %vm2054 = vcmp.ge.f32.partialorder %v2022, 0.001
        %vm2055 = vcmp.ge.f32.partialorder %v2023, 0.001
        %vm2056 = vcmp.ge.f32.partialorder %v2024, 0.001
        %vm2057 = vcmp.ge.f32.partialorder %v2025, 0.001
        %vm2058 = vcmp.ge.f32.partialorder %v2026, 0.001
        %vm2059 = vcmp.ge.f32.partialorder %v2027, 0.001
        %vm2060 = vcmp.ge.f32.partialorder %v2028, 0.001
        %vm2061 = vcmp.ge.f32.partialorder %v2029, 0.001
        %vm2062 = vcmp.ge.f32.partialorder %v2030, 0.001
        %vm2063 = vcmp.ge.f32.partialorder %v2031, 0.001
        %vm2064 = vcmp.ge.f32.partialorder %v2032, 0.001
        %vm2065 = vcmp.ge.f32.partialorder %v2033, 0.001
        %vm2066 = vcmp.ge.f32.partialorder %v2034, 0.001
        %vm2067 = vcmp.ge.f32.partialorder %v2035, 0.001
        %vm2068 = vcmp.ge.f32.partialorder %v2036, 0.001
        %vm2069 = vcmp.ge.f32.partialorder %v2037, 0.001
        %vm2070 = vcmp.ge.f32.partialorder %v2038, 0.001
        %vm2071 = vcmp.ge.f32.partialorder %v2039, 0.001
        %v2072 = vsel %vm2040, 1, 0
        %v2073 = vsel %vm2041, 1, 0
        %v2074 = vsel %vm2042, 1, 0
        %v2075 = vsel %vm2043, 1, 0
        %v2076 = vsel %vm2044, 1, 0
        %v2077 = vsel %vm2045, 1, 0
        %v2078 = vsel %vm2046, 1, 0
        %v2079 = vsel %vm2047, 1, 0
        %v2080 = vsel %vm2048, 1, 0
        %v2081 = vsel %vm2049, 1, 0
        %v2082 = vsel %vm2050, 1, 0
        %v2083 = vsel %vm2051, 1, 0
        %v2084 = vsel %vm2052, 1, 0
        %v2085 = vsel %vm2053, 1, 0
        %v2086 = vsel %vm2054, 1, 0
        %v2087 = vsel %vm2055, 1, 0
        %v2088 = vsel %vm2056, 1, 0
        %v2089 = vsel %vm2057, 1, 0
        %v2090 = vsel %vm2058, 1, 0
        %v2091 = vsel %vm2059, 1, 0
        %v2092 = vsel %vm2060, 1, 0
        %v2093 = vsel %vm2061, 1, 0
        %v2094 = vsel %vm2062, 1, 0
        %v2095 = vsel %vm2063, 1, 0
        %v2096 = vsel %vm2064, 1, 0
        %v2097 = vsel %vm2065, 1, 0
        %v2098 = vsel %vm2066, 1, 0
        %v2099 = vsel %vm2067, 1, 0
        %v2100 = vsel %vm2068, 1, 0
        %v2101 = vsel %vm2069, 1, 0
        %v2102 = vsel %vm2070, 1, 0
        %v2103 = vsel %vm2071, 1, 0
        %2104 = vrot.lane.b32.xlu0 %v2072, 125
        %v2105 = vpop.permute.xlu0 %2104
        %2106 = vrot.lane.b32.xlu0 %v2073, 125
        %v2107 = vpop.permute.xlu0 %2106
        %2108 = vrot.lane.b32.xlu0 %v2074, 125
        %v2109 = vpop.permute.xlu0 %2108
        %2110 = vrot.lane.b32.xlu0 %v2075, 125
        %v2111 = vpop.permute.xlu0 %2110
        %2112 = vrot.lane.b32.xlu0 %v2076, 125
        %v2113 = vpop.permute.xlu0 %2112
        %2114 = vrot.lane.b32.xlu0 %v2077, 125
        %v2115 = vpop.permute.xlu0 %2114
        %2116 = vrot.lane.b32.xlu0 %v2078, 125
        %v2117 = vpop.permute.xlu0 %2116
        %2118 = vrot.lane.b32.xlu0 %v2079, 125
        %v2119 = vpop.permute.xlu0 %2118
        %2120 = vrot.lane.b32.xlu0 %v2080, 125
        %v2121 = vpop.permute.xlu0 %2120
        %2122 = vrot.lane.b32.xlu0 %v2081, 125
        %v2123 = vpop.permute.xlu0 %2122
        %2124 = vrot.lane.b32.xlu0 %v2082, 125
        %v2125 = vpop.permute.xlu0 %2124
        %2126 = vrot.lane.b32.xlu0 %v2083, 125
        %v2127 = vpop.permute.xlu0 %2126
        %2128 = vrot.lane.b32.xlu0 %v2084, 125
        %v2129 = vpop.permute.xlu0 %2128
        %2130 = vrot.lane.b32.xlu0 %v2085, 125
        %v2131 = vpop.permute.xlu0 %2130
        %2132 = vrot.lane.b32.xlu0 %v2086, 125
        %v2133 = vpop.permute.xlu0 %2132
        %2134 = vrot.lane.b32.xlu0 %v2087, 125
        %v2135 = vpop.permute.xlu0 %2134
        %2136 = vrot.lane.b32.xlu0 %v2088, 125
        %v2137 = vpop.permute.xlu0 %2136
        %2138 = vrot.lane.b32.xlu0 %v2089, 125
        %v2139 = vpop.permute.xlu0 %2138
        %2140 = vrot.lane.b32.xlu0 %v2090, 125
        %v2141 = vpop.permute.xlu0 %2140
        %2142 = vrot.lane.b32.xlu0 %v2091, 125
        %v2143 = vpop.permute.xlu0 %2142
        %2144 = vrot.lane.b32.xlu0 %v2092, 125
        %v2145 = vpop.permute.xlu0 %2144
        %2146 = vrot.lane.b32.xlu0 %v2093, 125
        %v2147 = vpop.permute.xlu0 %2146
        %2148 = vrot.lane.b32.xlu0 %v2094, 125
        %v2149 = vpop.permute.xlu0 %2148
        %2150 = vrot.lane.b32.xlu0 %v2095, 125
        %v2151 = vpop.permute.xlu0 %2150
        %2152 = vrot.lane.b32.xlu0 %v2096, 125
        %v2153 = vpop.permute.xlu0 %2152
        %2154 = vrot.lane.b32.xlu0 %v2097, 125
        %v2155 = vpop.permute.xlu0 %2154
        %2156 = vrot.lane.b32.xlu0 %v2098, 125
        %v2157 = vpop.permute.xlu0 %2156
        %2158 = vrot.lane.b32.xlu0 %v2099, 125
        %v2159 = vpop.permute.xlu0 %2158
        %2160 = vrot.lane.b32.xlu0 %v2100, 125
        %v2161 = vpop.permute.xlu0 %2160
        %2162 = vrot.lane.b32.xlu0 %v2101, 125
        %v2163 = vpop.permute.xlu0 %2162
        %2164 = vrot.lane.b32.xlu0 %v2102, 125
        %v2165 = vpop.permute.xlu0 %2164
        %2166 = vrot.lane.b32.xlu0 %v2103, 125
        %v2167 = vpop.permute.xlu0 %2166
        %vm2168 = vcmp.ne.s32.totalorder %v2105, 0
        %vm2169 = vcmp.ne.s32.totalorder %v2107, 0
        %vm2170 = vcmp.ne.s32.totalorder %v2109, 0
        %vm2171 = vcmp.ne.s32.totalorder %v2111, 0
        %vm2172 = vcmp.ne.s32.totalorder %v2113, 0
        %vm2173 = vcmp.ne.s32.totalorder %v2115, 0
        %vm2174 = vcmp.ne.s32.totalorder %v2117, 0
        %vm2175 = vcmp.ne.s32.totalorder %v2119, 0
        %vm2176 = vcmp.ne.s32.totalorder %v2121, 0
        %vm2177 = vcmp.ne.s32.totalorder %v2123, 0
        %vm2178 = vcmp.ne.s32.totalorder %v2125, 0
        %vm2179 = vcmp.ne.s32.totalorder %v2127, 0
        %vm2180 = vcmp.ne.s32.totalorder %v2129, 0
        %vm2181 = vcmp.ne.s32.totalorder %v2131, 0
        %vm2182 = vcmp.ne.s32.totalorder %v2133, 0
        %vm2183 = vcmp.ne.s32.totalorder %v2135, 0
        %vm2184 = vcmp.ne.s32.totalorder %v2137, 0
        %vm2185 = vcmp.ne.s32.totalorder %v2139, 0
        %vm2186 = vcmp.ne.s32.totalorder %v2141, 0
        %vm2187 = vcmp.ne.s32.totalorder %v2143, 0
        %vm2188 = vcmp.ne.s32.totalorder %v2145, 0
        %vm2189 = vcmp.ne.s32.totalorder %v2147, 0
        %vm2190 = vcmp.ne.s32.totalorder %v2149, 0
        %vm2191 = vcmp.ne.s32.totalorder %v2151, 0
        %vm2192 = vcmp.ne.s32.totalorder %v2153, 0
        %vm2193 = vcmp.ne.s32.totalorder %v2155, 0
        %vm2194 = vcmp.ne.s32.totalorder %v2157, 0
        %vm2195 = vcmp.ne.s32.totalorder %v2159, 0
        %vm2196 = vcmp.ne.s32.totalorder %v2161, 0
        %vm2197 = vcmp.ne.s32.totalorder %v2163, 0
        %vm2198 = vcmp.ne.s32.totalorder %v2165, 0
        %vm2199 = vcmp.ne.s32.totalorder %v2167, 0
        %vm2200 = vmand %vm2040, %vm2168
        %vm2201 = vmand %vm2041, %vm2169
        %vm2202 = vmand %vm2042, %vm2170
        %vm2203 = vmand %vm2043, %vm2171
        %vm2204 = vmand %vm2044, %vm2172
        %vm2205 = vmand %vm2045, %vm2173
        %vm2206 = vmand %vm2046, %vm2174
        %vm2207 = vmand %vm2047, %vm2175
        %vm2208 = vmand %vm2048, %vm2176
        %vm2209 = vmand %vm2049, %vm2177
        %vm2210 = vmand %vm2050, %vm2178
        %vm2211 = vmand %vm2051, %vm2179
        %vm2212 = vmand %vm2052, %vm2180
        %vm2213 = vmand %vm2053, %vm2181
        %vm2214 = vmand %vm2054, %vm2182
        %vm2215 = vmand %vm2055, %vm2183
        %vm2216 = vmand %vm2056, %vm2184
        %vm2217 = vmand %vm2057, %vm2185
        %vm2218 = vmand %vm2058, %vm2186
        %vm2219 = vmand %vm2059, %vm2187
        %vm2220 = vmand %vm2060, %vm2188
        %vm2221 = vmand %vm2061, %vm2189
        %vm2222 = vmand %vm2062, %vm2190
        %vm2223 = vmand %vm2063, %vm2191
        %vm2224 = vmand %vm2064, %vm2192
        %vm2225 = vmand %vm2065, %vm2193
        %vm2226 = vmand %vm2066, %vm2194
        %vm2227 = vmand %vm2067, %vm2195
        %vm2228 = vmand %vm2068, %vm2196
        %vm2229 = vmand %vm2069, %vm2197
        %vm2230 = vmand %vm2070, %vm2198
        %vm2231 = vmand %vm2071, %vm2199
        %v2232 = vsel %vm2200, 1, 0
        %v2233 = vsel %vm2201, 1, 0
        %v2234 = vsel %vm2202, 1, 0
        %v2235 = vsel %vm2203, 1, 0
        %v2236 = vsel %vm2204, 1, 0
        %v2237 = vsel %vm2205, 1, 0
        %v2238 = vsel %vm2206, 1, 0
        %v2239 = vsel %vm2207, 1, 0
        %v2240 = vsel %vm2208, 1, 0
        %v2241 = vsel %vm2209, 1, 0
        %v2242 = vsel %vm2210, 1, 0
        %v2243 = vsel %vm2211, 1, 0
        %v2244 = vsel %vm2212, 1, 0
        %v2245 = vsel %vm2213, 1, 0
        %v2246 = vsel %vm2214, 1, 0
        %v2247 = vsel %vm2215, 1, 0
        %v2248 = vsel %vm2216, 1, 0
        %v2249 = vsel %vm2217, 1, 0
        %v2250 = vsel %vm2218, 1, 0
        %v2251 = vsel %vm2219, 1, 0
        %v2252 = vsel %vm2220, 1, 0
        %v2253 = vsel %vm2221, 1, 0
        %v2254 = vsel %vm2222, 1, 0
        %v2255 = vsel %vm2223, 1, 0
        %v2256 = vsel %vm2224, 1, 0
        %v2257 = vsel %vm2225, 1, 0
        %v2258 = vsel %vm2226, 1, 0
        %v2259 = vsel %vm2227, 1, 0
        %v2260 = vsel %vm2228, 1, 0
        %v2261 = vsel %vm2229, 1, 0
        %v2262 = vsel %vm2230, 1, 0
        %v2263 = vsel %vm2231, 1, 0
        %v2264 = vcvt.s32.f32 %v2232
        %v2265 = vcvt.s32.f32 %v2233
        %v2266 = vcvt.s32.f32 %v2234
        %v2267 = vcvt.s32.f32 %v2235
        %v2268 = vcvt.s32.f32 %v2236
        %v2269 = vcvt.s32.f32 %v2237
        %v2270 = vcvt.s32.f32 %v2238
        %v2271 = vcvt.s32.f32 %v2239
        %v2272 = vcvt.s32.f32 %v2240
        %v2273 = vcvt.s32.f32 %v2241
        %v2274 = vcvt.s32.f32 %v2242
        %v2275 = vcvt.s32.f32 %v2243
        %v2276 = vcvt.s32.f32 %v2244
        %v2277 = vcvt.s32.f32 %v2245
        %v2278 = vcvt.s32.f32 %v2246
        %v2279 = vcvt.s32.f32 %v2247
        %v2280 = vcvt.s32.f32 %v2248
        %v2281 = vcvt.s32.f32 %v2249
        %v2282 = vcvt.s32.f32 %v2250
        %v2283 = vcvt.s32.f32 %v2251
        %v2284 = vcvt.s32.f32 %v2252
        %v2285 = vcvt.s32.f32 %v2253
        %v2286 = vcvt.s32.f32 %v2254
        %v2287 = vcvt.s32.f32 %v2255
        %v2288 = vcvt.s32.f32 %v2256
        %v2289 = vcvt.s32.f32 %v2257
        %v2290 = vcvt.s32.f32 %v2258
        %v2291 = vcvt.s32.f32 %v2259
        %v2292 = vcvt.s32.f32 %v2260
        %v2293 = vcvt.s32.f32 %v2261
        %v2294 = vcvt.s32.f32 %v2262
        %v2295 = vcvt.s32.f32 %v2263
        %2328 = vrot.lane.b32.xlu0 %v1976, 6
        %v2329 = vpop.permute.xlu0 %2328
        %2330 = vrot.lane.b32.xlu0 %v1977, 6
        %v2331 = vpop.permute.xlu0 %2330
        %2332 = vrot.lane.b32.xlu0 %v1978, 6
        %v2333 = vpop.permute.xlu0 %2332
        %2334 = vrot.lane.b32.xlu0 %v1979, 6
        %v2335 = vpop.permute.xlu0 %2334
        %2336 = vrot.lane.b32.xlu0 %v1980, 6
        %v2337 = vpop.permute.xlu0 %2336
        %2338 = vrot.lane.b32.xlu0 %v1981, 6
        %v2339 = vpop.permute.xlu0 %2338
        %2340 = vrot.lane.b32.xlu0 %v1982, 6
        %v2341 = vpop.permute.xlu0 %2340
        %2342 = vrot.lane.b32.xlu0 %v1983, 6
        %v2343 = vpop.permute.xlu0 %2342
        %2344 = vrot.lane.b32.xlu0 %v1984, 6
        %v2345 = vpop.permute.xlu0 %2344
        %2346 = vrot.lane.b32.xlu0 %v1985, 6
        %v2347 = vpop.permute.xlu0 %2346
        %2348 = vrot.lane.b32.xlu0 %v1986, 6
        %v2349 = vpop.permute.xlu0 %2348
        %2350 = vrot.lane.b32.xlu0 %v1987, 6
        %v2351 = vpop.permute.xlu0 %2350
        %2352 = vrot.lane.b32.xlu0 %v1988, 6
        %v2353 = vpop.permute.xlu0 %2352
        %2354 = vrot.lane.b32.xlu0 %v1989, 6
        %v2355 = vpop.permute.xlu0 %2354
        %2356 = vrot.lane.b32.xlu0 %v1990, 6
        %v2357 = vpop.permute.xlu0 %2356
        %2358 = vrot.lane.b32.xlu0 %v1991, 6
        %v2359 = vpop.permute.xlu0 %2358
        %2360 = vrot.lane.b32.xlu0 %v1992, 6
        %v2361 = vpop.permute.xlu0 %2360
        %2362 = vrot.lane.b32.xlu0 %v1993, 6
        %v2363 = vpop.permute.xlu0 %2362
        %2364 = vrot.lane.b32.xlu0 %v1994, 6
        %v2365 = vpop.permute.xlu0 %2364
        %2366 = vrot.lane.b32.xlu0 %v1995, 6
        %v2367 = vpop.permute.xlu0 %2366
        %2368 = vrot.lane.b32.xlu0 %v1996, 6
        %v2369 = vpop.permute.xlu0 %2368
        %2370 = vrot.lane.b32.xlu0 %v1997, 6
        %v2371 = vpop.permute.xlu0 %2370
        %2372 = vrot.lane.b32.xlu0 %v1998, 6
        %v2373 = vpop.permute.xlu0 %2372
        %2374 = vrot.lane.b32.xlu0 %v1999, 6
        %v2375 = vpop.permute.xlu0 %2374
        %2376 = vrot.lane.b32.xlu0 %v2000, 6
        %v2377 = vpop.permute.xlu0 %2376
        %2378 = vrot.lane.b32.xlu0 %v2001, 6
        %v2379 = vpop.permute.xlu0 %2378
        %2380 = vrot.lane.b32.xlu0 %v2002, 6
        %v2381 = vpop.permute.xlu0 %2380
        %2382 = vrot.lane.b32.xlu0 %v2003, 6
        %v2383 = vpop.permute.xlu0 %2382
        %2384 = vrot.lane.b32.xlu0 %v2004, 6
        %v2385 = vpop.permute.xlu0 %2384
        %2386 = vrot.lane.b32.xlu0 %v2005, 6
        %v2387 = vpop.permute.xlu0 %2386
        %2388 = vrot.lane.b32.xlu0 %v2006, 6
        %v2389 = vpop.permute.xlu0 %2388
        %2390 = vrot.lane.b32.xlu0 %v2007, 6
        %v2391 = vpop.permute.xlu0 %2390
        %2456 = vrot.lane.b32.xlu0 %v2264, 12
        %v2457 = vpop.permute.xlu0 %2456
        %2458 = vrot.lane.b32.xlu0 %v2265, 12
        %v2459 = vpop.permute.xlu0 %2458
        %2460 = vrot.lane.b32.xlu0 %v2266, 12
        %v2461 = vpop.permute.xlu0 %2460
        %2462 = vrot.lane.b32.xlu0 %v2267, 12
        %v2463 = vpop.permute.xlu0 %2462
        %2464 = vrot.lane.b32.xlu0 %v2268, 12
        %v2465 = vpop.permute.xlu0 %2464
        %2466 = vrot.lane.b32.xlu0 %v2269, 12
        %v2467 = vpop.permute.xlu0 %2466
        %2468 = vrot.lane.b32.xlu0 %v2270, 12
        %v2469 = vpop.permute.xlu0 %2468
        %2470 = vrot.lane.b32.xlu0 %v2271, 12
        %v2471 = vpop.permute.xlu0 %2470
        %2472 = vrot.lane.b32.xlu0 %v2272, 12
        %v2473 = vpop.permute.xlu0 %2472
        %2474 = vrot.lane.b32.xlu0 %v2273, 12
        %v2475 = vpop.permute.xlu0 %2474
        %2476 = vrot.lane.b32.xlu0 %v2274, 12
        %v2477 = vpop.permute.xlu0 %2476
        %2478 = vrot.lane.b32.xlu0 %v2275, 12
        %v2479 = vpop.permute.xlu0 %2478
        %2480 = vrot.lane.b32.xlu0 %v2276, 12
        %v2481 = vpop.permute.xlu0 %2480
        %2482 = vrot.lane.b32.xlu0 %v2277, 12
        %v2483 = vpop.permute.xlu0 %2482
        %2484 = vrot.lane.b32.xlu0 %v2278, 12
        %v2485 = vpop.permute.xlu0 %2484
        %2486 = vrot.lane.b32.xlu0 %v2279, 12
        %v2487 = vpop.permute.xlu0 %2486
        %2488 = vrot.lane.b32.xlu0 %v2280, 12
        %v2489 = vpop.permute.xlu0 %2488
        %2490 = vrot.lane.b32.xlu0 %v2281, 12
        %v2491 = vpop.permute.xlu0 %2490
        %2492 = vrot.lane.b32.xlu0 %v2282, 12
        %v2493 = vpop.permute.xlu0 %2492
        %2494 = vrot.lane.b32.xlu0 %v2283, 12
        %v2495 = vpop.permute.xlu0 %2494
        %2496 = vrot.lane.b32.xlu0 %v2284, 12
        %v2497 = vpop.permute.xlu0 %2496
        %2498 = vrot.lane.b32.xlu0 %v2285, 12
        %v2499 = vpop.permute.xlu0 %2498
        %2500 = vrot.lane.b32.xlu0 %v2286, 12
        %v2501 = vpop.permute.xlu0 %2500
        %2502 = vrot.lane.b32.xlu0 %v2287, 12
        %v2503 = vpop.permute.xlu0 %2502
        %2504 = vrot.lane.b32.xlu0 %v2288, 12
        %v2505 = vpop.permute.xlu0 %2504
        %2506 = vrot.lane.b32.xlu0 %v2289, 12
        %v2507 = vpop.permute.xlu0 %2506
        %2508 = vrot.lane.b32.xlu0 %v2290, 12
        %v2509 = vpop.permute.xlu0 %2508
        %2510 = vrot.lane.b32.xlu0 %v2291, 12
        %v2511 = vpop.permute.xlu0 %2510
        %2512 = vrot.lane.b32.xlu0 %v2292, 12
        %v2513 = vpop.permute.xlu0 %2512
        %2514 = vrot.lane.b32.xlu0 %v2293, 12
        %v2515 = vpop.permute.xlu0 %2514
        %2516 = vrot.lane.b32.xlu0 %v2294, 12
        %v2517 = vpop.permute.xlu0 %2516
        %2518 = vrot.lane.b32.xlu0 %v2295, 12
        %v2519 = vpop.permute.xlu0 %2518
        %vm2552 = vcmask 23552
        %v2553 = vsel %vm2552, %v890, %v1880
        %v2554 = vsel %vm2552, %v893, %v1881
        %v2555 = vsel %vm2552, %v898, %v1882
        %v2556 = vsel %vm2552, %v901, %v1883
        %v2557 = vsel %vm2552, %v906, %v1884
        %v2558 = vsel %vm2552, %v909, %v1885
        %v2559 = vsel %vm2552, %v914, %v1886
        %v2560 = vsel %vm2552, %v917, %v1887
        %v2561 = vsel %vm2552, %v922, %v1888
        %v2562 = vsel %vm2552, %v925, %v1889
        %v2563 = vsel %vm2552, %v930, %v1890
        %v2564 = vsel %vm2552, %v933, %v1891
        %v2565 = vsel %vm2552, %v938, %v1892
        %v2566 = vsel %vm2552, %v941, %v1893
        %v2567 = vsel %vm2552, %v946, %v1894
        %v2568 = vsel %vm2552, %v949, %v1895
        %v2569 = vsel %vm2552, %v954, %v1896
        %v2570 = vsel %vm2552, %v957, %v1897
        %v2571 = vsel %vm2552, %v962, %v1898
        %v2572 = vsel %vm2552, %v965, %v1899
        %v2573 = vsel %vm2552, %v970, %v1900
        %v2574 = vsel %vm2552, %v973, %v1901
        %v2575 = vsel %vm2552, %v978, %v1902
        %v2576 = vsel %vm2552, %v981, %v1903
        %v2577 = vsel %vm2552, %v986, %v1904
        %v2578 = vsel %vm2552, %v989, %v1905
        %v2579 = vsel %vm2552, %v994, %v1906
        %v2580 = vsel %vm2552, %v997, %v1907
        %v2581 = vsel %vm2552, %v1002, %v1908
        %v2582 = vsel %vm2552, %v1005, %v1909
        %v2583 = vsel %vm2552, %v1010, %v1910
        %v2584 = vsel %vm2552, %v1013, %v1911
        %vm2585 = vcmask 48128
        %v2586 = vsel %vm2585, %v2553, %v1880
        %v2587 = vsel %vm2585, %v2554, %v1881
        %v2588 = vsel %vm2585, %v2555, %v1882
        %v2589 = vsel %vm2585, %v2556, %v1883
        %v2590 = vsel %vm2585, %v2557, %v1884
        %v2591 = vsel %vm2585, %v2558, %v1885
        %v2592 = vsel %vm2585, %v2559, %v1886
        %v2593 = vsel %vm2585, %v2560, %v1887
        %v2594 = vsel %vm2585, %v2561, %v1888
        %v2595 = vsel %vm2585, %v2562, %v1889
        %v2596 = vsel %vm2585, %v2563, %v1890
        %v2597 = vsel %vm2585, %v2564, %v1891
        %v2598 = vsel %vm2585, %v2565, %v1892
        %v2599 = vsel %vm2585, %v2566, %v1893
        %v2600 = vsel %vm2585, %v2567, %v1894
        %v2601 = vsel %vm2585, %v2568, %v1895
        %v2602 = vsel %vm2585, %v2569, %v1896
        %v2603 = vsel %vm2585, %v2570, %v1897
        %v2604 = vsel %vm2585, %v2571, %v1898
        %v2605 = vsel %vm2585, %v2572, %v1899
        %v2606 = vsel %vm2585, %v2573, %v1900
        %v2607 = vsel %vm2585, %v2574, %v1901
        %v2608 = vsel %vm2585, %v2575, %v1902
        %v2609 = vsel %vm2585, %v2576, %v1903
        %v2610 = vsel %vm2585, %v2577, %v1904
        %v2611 = vsel %vm2585, %v2578, %v1905
        %v2612 = vsel %vm2585, %v2579, %v1906
        %v2613 = vsel %vm2585, %v2580, %v1907
        %v2614 = vsel %vm2585, %v2581, %v1908
        %v2615 = vsel %vm2585, %v2582, %v1909
        %v2616 = vsel %vm2585, %v2583, %v1910
        %v2617 = vsel %vm2585, %v2584, %v1911
        %vm2618 = vcmask 72704
        %v2619 = vsel %vm2618, %v2586, %v2329
        %v2620 = vsel %vm2618, %v2587, %v2331
        %v2621 = vsel %vm2618, %v2588, %v2333
        %v2622 = vsel %vm2618, %v2589, %v2335
        %v2623 = vsel %vm2618, %v2590, %v2337
        %v2624 = vsel %vm2618, %v2591, %v2339
        %v2625 = vsel %vm2618, %v2592, %v2341
        %v2626 = vsel %vm2618, %v2593, %v2343
        %v2627 = vsel %vm2618, %v2594, %v2345
        %v2628 = vsel %vm2618, %v2595, %v2347
        %v2629 = vsel %vm2618, %v2596, %v2349
        %v2630 = vsel %vm2618, %v2597, %v2351
        %v2631 = vsel %vm2618, %v2598, %v2353
        %v2632 = vsel %vm2618, %v2599, %v2355
        %v2633 = vsel %vm2618, %v2600, %v2357
        %v2634 = vsel %vm2618, %v2601, %v2359
        %v2635 = vsel %vm2618, %v2602, %v2361
        %v2636 = vsel %vm2618, %v2603, %v2363
        %v2637 = vsel %vm2618, %v2604, %v2365
        %v2638 = vsel %vm2618, %v2605, %v2367
        %v2639 = vsel %vm2618, %v2606, %v2369
        %v2640 = vsel %vm2618, %v2607, %v2371
        %v2641 = vsel %vm2618, %v2608, %v2373
        %v2642 = vsel %vm2618, %v2609, %v2375
        %v2643 = vsel %vm2618, %v2610, %v2377
        %v2644 = vsel %vm2618, %v2611, %v2379
        %v2645 = vsel %vm2618, %v2612, %v2381
        %v2646 = vsel %vm2618, %v2613, %v2383
        %v2647 = vsel %vm2618, %v2614, %v2385
        %v2648 = vsel %vm2618, %v2615, %v2387
        %v2649 = vsel %vm2618, %v2616, %v2389
        %v2650 = vsel %vm2618, %v2617, %v2391
        %vm2651 = vcmask 97280
        %v2652 = vsel %vm2651, %v2619, %v2329
        %v2653 = vsel %vm2651, %v2620, %v2331
        %v2654 = vsel %vm2651, %v2621, %v2333
        %v2655 = vsel %vm2651, %v2622, %v2335
        %v2656 = vsel %vm2651, %v2623, %v2337
        %v2657 = vsel %vm2651, %v2624, %v2339
        %v2658 = vsel %vm2651, %v2625, %v2341
        %v2659 = vsel %vm2651, %v2626, %v2343
        %v2660 = vsel %vm2651, %v2627, %v2345
        %v2661 = vsel %vm2651, %v2628, %v2347
        %v2662 = vsel %vm2651, %v2629, %v2349
        %v2663 = vsel %vm2651, %v2630, %v2351
        %v2664 = vsel %vm2651, %v2631, %v2353
        %v2665 = vsel %vm2651, %v2632, %v2355
        %v2666 = vsel %vm2651, %v2633, %v2357
        %v2667 = vsel %vm2651, %v2634, %v2359
        %v2668 = vsel %vm2651, %v2635, %v2361
        %v2669 = vsel %vm2651, %v2636, %v2363
        %v2670 = vsel %vm2651, %v2637, %v2365
        %v2671 = vsel %vm2651, %v2638, %v2367
        %v2672 = vsel %vm2651, %v2639, %v2369
        %v2673 = vsel %vm2651, %v2640, %v2371
        %v2674 = vsel %vm2651, %v2641, %v2373
        %v2675 = vsel %vm2651, %v2642, %v2375
        %v2676 = vsel %vm2651, %v2643, %v2377
        %v2677 = vsel %vm2651, %v2644, %v2379
        %v2678 = vsel %vm2651, %v2645, %v2381
        %v2679 = vsel %vm2651, %v2646, %v2383
        %v2680 = vsel %vm2651, %v2647, %v2385
        %v2681 = vsel %vm2651, %v2648, %v2387
        %v2682 = vsel %vm2651, %v2649, %v2389
        %v2683 = vsel %vm2651, %v2650, %v2391
        %vm2684 = vcmask 121856
        %v2685 = vsel %vm2684, %v2652, %v2457
        %v2686 = vsel %vm2684, %v2653, %v2459
        %v2687 = vsel %vm2684, %v2654, %v2461
        %v2688 = vsel %vm2684, %v2655, %v2463
        %v2689 = vsel %vm2684, %v2656, %v2465
        %v2690 = vsel %vm2684, %v2657, %v2467
        %v2691 = vsel %vm2684, %v2658, %v2469
        %v2692 = vsel %vm2684, %v2659, %v2471
        %v2693 = vsel %vm2684, %v2660, %v2473
        %v2694 = vsel %vm2684, %v2661, %v2475
        %v2695 = vsel %vm2684, %v2662, %v2477
        %v2696 = vsel %vm2684, %v2663, %v2479
        %v2697 = vsel %vm2684, %v2664, %v2481
        %v2698 = vsel %vm2684, %v2665, %v2483
        %v2699 = vsel %vm2684, %v2666, %v2485
        %v2700 = vsel %vm2684, %v2667, %v2487
        %v2701 = vsel %vm2684, %v2668, %v2489
        %v2702 = vsel %vm2684, %v2669, %v2491
        %v2703 = vsel %vm2684, %v2670, %v2493
        %v2704 = vsel %vm2684, %v2671, %v2495
        %v2705 = vsel %vm2684, %v2672, %v2497
        %v2706 = vsel %vm2684, %v2673, %v2499
        %v2707 = vsel %vm2684, %v2674, %v2501
        %v2708 = vsel %vm2684, %v2675, %v2503
        %v2709 = vsel %vm2684, %v2676, %v2505
        %v2710 = vsel %vm2684, %v2677, %v2507
        %v2711 = vsel %vm2684, %v2678, %v2509
        %v2712 = vsel %vm2684, %v2679, %v2511
        %v2713 = vsel %vm2684, %v2680, %v2513
        %v2714 = vsel %vm2684, %v2681, %v2515
        %v2715 = vsel %vm2684, %v2682, %v2517
        %v2716 = vsel %vm2684, %v2683, %v2519
        %vm2717 = vcmask 146432
        %v2718 = vsel %vm2717, %v2685, %v890
        %v2719 = vsel %vm2717, %v2686, %v893
        %v2720 = vsel %vm2717, %v2687, %v898
        %v2721 = vsel %vm2717, %v2688, %v901
        %v2722 = vsel %vm2717, %v2689, %v906
        %v2723 = vsel %vm2717, %v2690, %v909
        %v2724 = vsel %vm2717, %v2691, %v914
        %v2725 = vsel %vm2717, %v2692, %v917
        %v2726 = vsel %vm2717, %v2693, %v922
        %v2727 = vsel %vm2717, %v2694, %v925
        %v2728 = vsel %vm2717, %v2695, %v930
        %v2729 = vsel %vm2717, %v2696, %v933
        %v2730 = vsel %vm2717, %v2697, %v938
        %v2731 = vsel %vm2717, %v2698, %v941
        %v2732 = vsel %vm2717, %v2699, %v946
        %v2733 = vsel %vm2717, %v2700, %v949
        %v2734 = vsel %vm2717, %v2701, %v954
        %v2735 = vsel %vm2717, %v2702, %v957
        %v2736 = vsel %vm2717, %v2703, %v962
        %v2737 = vsel %vm2717, %v2704, %v965
        %v2738 = vsel %vm2717, %v2705, %v970
        %v2739 = vsel %vm2717, %v2706, %v973
        %v2740 = vsel %vm2717, %v2707, %v978
        %v2741 = vsel %vm2717, %v2708, %v981
        %v2742 = vsel %vm2717, %v2709, %v986
        %v2743 = vsel %vm2717, %v2710, %v989
        %v2744 = vsel %vm2717, %v2711, %v994
        %v2745 = vsel %vm2717, %v2712, %v997
        %v2746 = vsel %vm2717, %v2713, %v1002
        %v2747 = vsel %vm2717, %v2714, %v1005
        %v2748 = vsel %vm2717, %v2715, %v1010
        %v2749 = vsel %vm2717, %v2716, %v1013
        %2750 = vst [vmem:[%s263] sm:$0xff] %v2718
        %2751 = vst [vmem:[%s263 + $0x8] sm:$0xff] %v2719
        %2752 = vst [vmem:[%s263 + $0x10] sm:$0xff] %v2720
        %2753 = vst [vmem:[%s263 + $0x18] sm:$0xff] %v2721
        %2754 = vst [vmem:[%s263 + $0x20] sm:$0xff] %v2722
        %2755 = vst [vmem:[%s263 + $0x28] sm:$0xff] %v2723
        %2756 = vst [vmem:[%s263 + $0x30] sm:$0xff] %v2724
        %2757 = vst [vmem:[%s263 + $0x38] sm:$0xff] %v2725
        %2758 = vst [vmem:[%s263 + $0x40] sm:$0xff] %v2726
        %2759 = vst [vmem:[%s263 + $0x48] sm:$0xff] %v2727
        %2760 = vst [vmem:[%s263 + $0x50] sm:$0xff] %v2728
        %2761 = vst [vmem:[%s263 + $0x58] sm:$0xff] %v2729
        %2762 = vst [vmem:[%s263 + $0x60] sm:$0xff] %v2730
        %2763 = vst [vmem:[%s263 + $0x68] sm:$0xff] %v2731
        %2764 = vst [vmem:[%s263 + $0x70] sm:$0xff] %v2732
        %2765 = vst [vmem:[%s263 + $0x78] sm:$0xff] %v2733
        %2766 = vst [vmem:[%s263 + $0x80] sm:$0xff] %v2734
        %2767 = vst [vmem:[%s263 + $0x88] sm:$0xff] %v2735
        %2768 = vst [vmem:[%s263 + $0x90] sm:$0xff] %v2736
        %2769 = vst [vmem:[%s263 + $0x98] sm:$0xff] %v2737
        %2770 = vst [vmem:[%s263 + $0xa0] sm:$0xff] %v2738
        %2771 = vst [vmem:[%s263 + $0xa8] sm:$0xff] %v2739
        %2772 = vst [vmem:[%s263 + $0xb0] sm:$0xff] %v2740
        %2773 = vst [vmem:[%s263 + $0xb8] sm:$0xff] %v2741
        %2774 = vst [vmem:[%s263 + $0xc0] sm:$0xff] %v2742
        %2775 = vst [vmem:[%s263 + $0xc8] sm:$0xff] %v2743
        %2776 = vst [vmem:[%s263 + $0xd0] sm:$0xff] %v2744
        %2777 = vst [vmem:[%s263 + $0xd8] sm:$0xff] %v2745
        %2778 = vst [vmem:[%s263 + $0xe0] sm:$0xff] %v2746
        %2779 = vst [vmem:[%s263 + $0xe8] sm:$0xff] %v2747
        %2780 = vst [vmem:[%s263 + $0xf0] sm:$0xff] %v2748
        %2781 = vst [vmem:[%s263 + $0xf8] sm:$0xff] %v2749
        %s2782 = sand.u32 %s164, 1
        %s2783 = scalar_lea.sflag [#allocation3], %s2782
        %s2784 = sand.u32 %s164, 1
        %s2785 = smul.addr %s2784, 256
        %s2786 = scalar_lea.vmem [#allocation2], %s2785
        // Predicated region
        $region45: #{tpu_custom_call.1} parent=43 // pred_check
          %p2787 = pneg %p174
        $region46: #{tpu_custom_call.1} parent=43 // pred_check_branch
          %2789 = sbr.rel (%p2787) target = $region48
        $region47: #{tpu_custom_call.1} parent=43 // pred_region
          %s2790 = smul.u32 32, %s20
          %s2792 = ssub.s32 4096, 4096
          %2793 = vsyncadd %s2783, %s2792
          %s2794 = smul.addr %s2790, 128
          %s2795 = scalar_lea.hbm %s6, %s2794
          %s2796 = sshll.u32 %s2786, 4
          %s2797 = int_to_ptr.vmem [resolvable:$true] %s2796
          %2802 = dma.vmem_to_hbm [thread:$0]  %s2797, 4096, %s2795, %s2783, 128, 128, 8
        $region48: #{tpu_custom_call.1} parent=43 // pred_fallthru
          _
      $region44: #{tpu_custom_call.1} parent=5 // pred_fallthru
        _
      %p2803 = scmp.le.s32.totalorder 2, %s15
      // Predicated region
      $region49: #{tpu_custom_call.1} parent=5 // pred_check
        %p2804 = pneg %p2803
      $region50: #{tpu_custom_call.1} parent=5 // pred_check_branch
        %2806 = sbr.rel (%p2804) target = $region52
      $region51: #{tpu_custom_call.1} parent=5 // pred_region
        %s2807 = ssub.s32 %s15, 2
        // Predicated region
        $region53: #{tpu_custom_call.1} parent=51 // pred_check
          %p2808 = pneg %p180
        $region54: #{tpu_custom_call.1} parent=51 // pred_check_branch
          %2810 = sbr.rel (%p2808) target = $region56
        $region55: #{tpu_custom_call.1} parent=51 // pred_region
          %s2811 = sand.u32 %s165, 1
          %s2812 = scalar_lea.sflag [#allocation3], %s2811
          %s2813 = sand.u32 %s165, 1
          %s2814 = smul.addr %s2813, 256
          %s2815 = scalar_lea.vmem [#allocation2], %s2814
          %2816 = dma.done %s2812, 4096
        $region56: #{tpu_custom_call.1} parent=51 // pred_fallthru
          _
      $region52: #{tpu_custom_call.1} parent=5 // pred_fallthru
        _
    $region6: #{tpu_custom_call.1} parent=1 // loop_footer
      %s19 = sadd.s32 1, %s15
    $region7: #{tpu_custom_call.1} parent=1 // loop_footer_branch
      %14 = sbr.rel target = $region3
    $region8: #{tpu_custom_call.1} parent=1 // loop_exit
      _
    %2817 = vsyncpa [#allocation3], 1
    %s2818 = scalar_lea.sflag [#allocation3], 1
    %2819 = vsyncpa %s2818, 1

</llo_original>
